<compile_context>
chip_gen: v5e
topology: v5e:2x2
jax: 0.10.0
libtpu: 0.0.40
codegen_flags: <defaults>
</compile_context>

<pallas_src>
import functools

import jax
import jax.numpy as jnp
from jax.experimental import pallas as pl
from jax.experimental.pallas import tpu as pltpu

conv1_out = 32
conv2_out = 64
conv3_out = 128
conv4_out = 256
conv5_out = 128
conv6_out = 64
fc1_num = 16
num_classes = 4

H_IN = 4                     # input spatial size implied by x.view(-1, conv6_out)
W_IN = 4
IMG_ROWS = H_IN * W_IN       # rows per image in the fixed frame (r = h*W_IN + w)
PAD_ROWS = 8                 # zero rows appended so shifted tap reads stay in bounds

_CONV_SPECS = [
    (1,         conv1_out, (1, 2)),
    (conv1_out, conv2_out, (2, 1)),
    (conv2_out, conv3_out, (1, 2)),
    (conv3_out, conv4_out, (2, 1)),
    (conv4_out, conv5_out, (1, 2)),
    (conv5_out, conv6_out, (2, 1)),
]
# Activation frames kept in VMEM scratch (conv1..conv5 outputs only; conv6 is
# computed compactly straight into the head).
_FRAME_CH = [conv1_out, conv2_out, conv3_out, conv4_out, conv5_out]


# ---------------------------------------------------------------------------
# Fused Pallas kernel: whole Net forward on a fixed VMEM frame per layer
# ---------------------------------------------------------------------------
def _net_kernel(bhw, batch,
                x_ref,
                w1_ref, b1_ref, w2_ref, b2_ref, w3_ref, b3_ref,
                w4_ref, b4_ref, w5_ref, b5_ref, w6_ref, b6_ref,
                fw1_ref, fb1_ref, fw2_ref, fb2_ref,
                o_ref,
                s1, s2, s3, s4, s5):
    # Zero ONLY the pad tail of the frames whose shifted tap reads can touch
    # it (s1..s4).  Rows [0, bhw) of every frame are fully overwritten by the
    # producing layer's store before any consumer reads them, and s5 is only
    # read at valid strided rows (< bhw), so those stores are skipped.
    for s in (s1, s2, s3, s4):
        s[pl.ds(bhw, PAD_ROWS), :] = jnp.zeros((PAD_ROWS, s.shape[-1]),
                                               jnp.float32)

    # conv1: cin=1, kernel [1,2] -> VPU broadcast FMA (a K=1 matmul would
    # waste the MXU).  Tap shift along W is +1 frame row.
    w1 = w1_ref[...].astype(jnp.float32)                 # (2, 32)
    a0 = x_ref[pl.ds(0, bhw), :]                         # (bhw, 1)
    a1 = x_ref[pl.ds(1, bhw), :]                         # (bhw, 1), second tap
    y1 = a0 * w1[0:1, :] + a1 * w1[1:2, :] + b1_ref[...]
    s1[pl.ds(0, bhw), :] = jnp.maximum(y1, 0.0)

    # conv2/conv3 (cin < 128): the lane concat would cross a non-128 lane
    # boundary (XLU shuffles), so use two accumulating MXU dots against
    # sublane-aligned slices of the stacked weight instead.
    def conv_twodot(src, dst, w_ref, b_ref, shift, cin):
        t0 = src[pl.ds(0, bhw), :]
        t1 = src[pl.ds(shift, bhw), :]
        y = (jnp.dot(t0, w_ref[0:cin, :].astype(jnp.float32),
                     preferred_element_type=jnp.float32)
             + jnp.dot(t1, w_ref[cin:2 * cin, :].astype(jnp.float32),
                       preferred_element_type=jnp.float32)
             + b_ref[...])
        dst[pl.ds(0, bhw), :] = jnp.maximum(y, 0.0)

    # conv4/conv5 (cin >= 128): lane-aligned concat -> one stacked-K MXU dot.
    def conv_stacked(src, dst, w_ref, b_ref, shift):
        t0 = src[pl.ds(0, bhw), :]
        t1 = src[pl.ds(shift, bhw), :]
        a = jnp.concatenate([t0, t1], axis=-1)           # (bhw, 2*cin)
        y = (jnp.dot(a, w_ref[...].astype(jnp.float32),
                     preferred_element_type=jnp.float32)
             + b_ref[...])
        dst[pl.ds(0, bhw), :] = jnp.maximum(y, 0.0)

    conv_twodot(s1, s2, w2_ref, b2_ref, W_IN, conv1_out)   # [2,1]: taps along H
    conv_twodot(s2, s3, w3_ref, b3_ref, 1, conv2_out)      # [1,2]: taps along W
    conv_stacked(s3, s4, w4_ref, b4_ref, W_IN)             # [2,1]
    conv_stacked(s4, s5, w5_ref, b5_ref, 1)                # [1,2]

    # conv6 [2,1]: only ONE valid output row per image (h=w=0).  Read its two
    # taps straight from s5 at strided rows (b*16 and b*16+4) — no s6 frame,
    # no 16x over-computation — and feed the compact (batch, 64) result into
    # the head.
    t0 = s5[pl.ds(0, batch, stride=IMG_ROWS), :]           # (batch, conv5_out)
    t1 = s5[pl.ds(W_IN, batch, stride=IMG_ROWS), :]        # (batch, conv5_out)
    a6 = jnp.concatenate([t0, t1], axis=-1)                # (batch, 2*conv5_out)
    x6 = jnp.maximum(
        jnp.dot(a6, w6_ref[...].astype(jnp.float32),
                preferred_element_type=jnp.float32) + b6_ref[...], 0.0)

    # Head: fc1 -> relu -> fc2 -> log_softmax, all in VMEM.
    h = jnp.maximum(
        jnp.dot(x6, fw1_ref[...].astype(jnp.float32),
                preferred_element_type=jnp.float32) + fb1_ref[...], 0.0)
    logits = (jnp.dot(h, fw2_ref[...].astype(jnp.float32),
                      preferred_element_type=jnp.float32) + fb2_ref[...])
    m = jnp.max(logits, axis=-1, keepdims=True)
    z = logits - m
    lse = jnp.log(jnp.sum(jnp.exp(z), axis=-1, keepdims=True))
    o_ref[...] = (z - lse).astype(o_ref.dtype)


def net_forward(x_nchw, params):
    b, cin, h, w = x_nchw.shape
    assert (cin, h, w) == (1, H_IN, W_IN), "Net requires (B, 1, 4, 4) inputs"
    bhw = b * IMG_ROWS
    frame = bhw + PAD_ROWS

    # NCHW with cin=1 flattens directly to frame row order r = b*16 + h*4 + w.
    xf = jnp.pad(x_nchw.astype(jnp.float32).reshape(bhw, 1),
                 ((0, PAD_ROWS), (0, 0)))

    # Weights go over the wire in bf16 (values are already bf16-representable,
    # so the cast is lossless); biases stay f32.
    args = [xf]
    for (_, wstack, bias) in params["convs"]:
        args += [wstack.astype(jnp.bfloat16), bias]
    (fw1, fb1), (fw2, fb2) = params["fc1"], params["fc2"]
    args += [fw1.astype(jnp.bfloat16), fb1, fw2.astype(jnp.bfloat16), fb2]

    # Advisory cost estimate so XLA can schedule / overlap the weight fetch.
    conv_rows = [bhw, bhw, bhw, bhw, bhw, b]   # conv6 runs compactly on b rows
    flops = 0
    for rows, (ci, co, _) in zip(conv_rows, _CONV_SPECS):
        flops += 2 * rows * (2 * ci) * co
    flops += 2 * b * conv6_out * fc1_num + 2 * b * fc1_num * num_classes
    bytes_accessed = (sum(int(a.size) * a.dtype.itemsize for a in args)
                      + b * num_classes * 4)
    cost = pl.CostEstimate(flops=flops,
                           transcendentals=b * (num_classes + 1),
                           bytes_accessed=bytes_accessed)

    vmem = pl.BlockSpec(memory_space=pltpu.MemorySpace.VMEM)
    scratch = [pltpu.VMEM((frame, c), jnp.float32) for c in _FRAME_CH]

    return pl.pallas_call(
        functools.partial(_net_kernel, bhw, b),
        out_shape=jax.ShapeDtypeStruct((b, num_classes), jnp.float32),
        in_specs=[vmem] * len(args),
        out_specs=vmem,
        scratch_shapes=scratch,
        cost_estimate=cost,
    )(*args)


# ---------------------------------------------------------------------------
# Parameter init (deterministic; mimics PyTorch's U(-1/sqrt(fan_in), ...) init)
# Weights are rounded to bf16-representable values so the bf16 weight DMA in
# net_forward is lossless and the f32 reference below stays an exact spec.
# ---------------------------------------------------------------------------
def _bf16_round(x):
    return x.astype(jnp.bfloat16).astype(jnp.float32)


def init_params(key):
    params = {"convs": []}
    for (cin, cout, (kh, kw)) in _CONV_SPECS:
        key, k_w, k_b = jax.random.split(key, 3)
        fan_in = cin * kh * kw
        bound = 1.0 / jnp.sqrt(jnp.float32(fan_in))
        w = jax.random.uniform(k_w, (cout, cin, kh, kw), jnp.float32,
                               minval=-bound, maxval=bound)
        bias = jax.random.uniform(k_b, (cout,), jnp.float32,
                                  minval=-bound, maxval=bound)
        # tap 0 / tap 1 weights stacked along K: (2*cin, cout) for a @ W
        w_taps = w.reshape(cout, cin, kh * kw)
        w0 = jnp.transpose(w_taps[:, :, 0], (1, 0))
        w1 = jnp.transpose(w_taps[:, :, 1], (1, 0))
        wstack = _bf16_round(jnp.concatenate([w0, w1], axis=0))
        tap_axis = 2 if kw == 2 else 1          # NHWC: axis 2 = W, axis 1 = H
        params["convs"].append((tap_axis, wstack, bias.reshape(1, cout)))

    def linear(key, cin, cout):
        k_w, k_b = jax.random.split(key)
        bound = 1.0 / jnp.sqrt(jnp.float32(cin))
        w = jax.random.uniform(k_w, (cout, cin), jnp.float32,
                               minval=-bound, maxval=bound)
        bias = jax.random.uniform(k_b, (cout,), jnp.float32,
                                  minval=-bound, maxval=bound)
        return _bf16_round(jnp.transpose(w, (1, 0))), bias.reshape(1, cout)

    key, k1, k2 = jax.random.split(key, 3)
    params["fc1"] = linear(k1, conv6_out, fc1_num)
    params["fc2"] = linear(k2, fc1_num, num_classes)
    return params


# ---------------------------------------------------------------------------
# Pure-JAX reference for correctness checking
# ---------------------------------------------------------------------------
def net_forward_ref(x_nchw, params):
    x = jnp.transpose(x_nchw, (0, 2, 3, 1)).astype(jnp.float32)   # NHWC
    for (tap_axis, wstack, bias) in params["convs"]:
        if tap_axis == 2:
            a0, a1 = x[:, :, :-1, :], x[:, :, 1:, :]
        else:
            a0, a1 = x[:, :-1, :, :], x[:, 1:, :, :]
        a = jnp.concatenate([a0, a1], axis=-1)
        x = jnp.maximum(a @ wstack + bias, 0.0)
    x = x.reshape(-1, conv6_out)
    (fw1, fb1), (fw2, fb2) = params["fc1"], params["fc2"]
    h = jnp.maximum(x @ fw1 + fb1, 0.0)
    logits = h @ fw2 + fb2
    return jax.nn.log_softmax(logits, axis=-1)


if __name__ == "__main__":
    key = jax.random.PRNGKey(0)
    k_params, k_x = jax.random.split(key)
    params = init_params(k_params)

    # input: batch=2, 1 channel, 4x4 spatial (the 6 convs reduce to 1x1,
    # matching x.view(-1, conv6_out))
    x = jax.random.normal(k_x, (2, 1, 4, 4), dtype=jnp.float32)

    out = jax.block_until_ready(net_forward(x, params))
    ref = jax.block_until_ready(net_forward_ref(x, params))

    assert out.shape == (2, num_classes), out.shape
    assert jnp.allclose(out, ref, rtol=1e-4, atol=1e-5), (out, ref)
    print("KERNEL_OK")
</pallas_src>

<mosaic_0001>
module attributes {stable_mosaic.version = 11 : i64} {
  func.func @_net_kernel(%arg0: memref<40x1xf32, #tpu.memory_space<vmem>>, %arg1: memref<2x32xbf16, #tpu.memory_space<vmem>>, %arg2: memref<1x32xf32, #tpu.memory_space<vmem>>, %arg3: memref<64x64xbf16, #tpu.memory_space<vmem>>, %arg4: memref<1x64xf32, #tpu.memory_space<vmem>>, %arg5: memref<128x128xbf16, #tpu.memory_space<vmem>>, %arg6: memref<1x128xf32, #tpu.memory_space<vmem>>, %arg7: memref<256x256xbf16, #tpu.memory_space<vmem>>, %arg8: memref<1x256xf32, #tpu.memory_space<vmem>>, %arg9: memref<512x128xbf16, #tpu.memory_space<vmem>>, %arg10: memref<1x128xf32, #tpu.memory_space<vmem>>, %arg11: memref<256x64xbf16, #tpu.memory_space<vmem>>, %arg12: memref<1x64xf32, #tpu.memory_space<vmem>>, %arg13: memref<64x16xbf16, #tpu.memory_space<vmem>>, %arg14: memref<1x16xf32, #tpu.memory_space<vmem>>, %arg15: memref<16x4xbf16, #tpu.memory_space<vmem>>, %arg16: memref<1x4xf32, #tpu.memory_space<vmem>>, %arg17: memref<2x4xf32, #tpu.memory_space<vmem>>, %arg18: memref<40x32xf32, #tpu.memory_space<vmem>>, %arg19: memref<40x64xf32, #tpu.memory_space<vmem>>, %arg20: memref<40x128xf32, #tpu.memory_space<vmem>>, %arg21: memref<40x256xf32, #tpu.memory_space<vmem>>, %arg22: memref<40x128xf32, #tpu.memory_space<vmem>>) attributes {dimension_semantics = [], scalar_prefetch = 0 : i64, scratch_operands = 5 : i64, tpu.core_type = #tpu.core_type<tc>} {
    %cst = arith.constant 0.000000e+00 : f32
    %0 = vector.broadcast %cst : f32 to vector<8x32xf32>
    %c32 = arith.constant 32 : index
    %c0 = arith.constant 0 : index
    %1 = vector.load %arg18[%c32, %c0] : memref<40x32xf32, #tpu.memory_space<vmem>>, vector<8x32xf32>
    tpu.vector_store %arg18[%c32, %c0], %0 {strides = array<i32>} : memref<40x32xf32, #tpu.memory_space<vmem>>, vector<8x32xf32>,
    %cst_0 = arith.constant 0.000000e+00 : f32
    %2 = vector.broadcast %cst_0 : f32 to vector<8x64xf32>
    %c32_1 = arith.constant 32 : index
    %c0_2 = arith.constant 0 : index
    %3 = vector.load %arg19[%c32_1, %c0_2] : memref<40x64xf32, #tpu.memory_space<vmem>>, vector<8x64xf32>
    tpu.vector_store %arg19[%c32_1, %c0_2], %2 {strides = array<i32>} : memref<40x64xf32, #tpu.memory_space<vmem>>, vector<8x64xf32>,
    %cst_3 = arith.constant 0.000000e+00 : f32
    %4 = vector.broadcast %cst_3 : f32 to vector<8x128xf32>
    %c32_4 = arith.constant 32 : index
    %c0_5 = arith.constant 0 : index
    %5 = vector.load %arg20[%c32_4, %c0_5] : memref<40x128xf32, #tpu.memory_space<vmem>>, vector<8x128xf32>
    tpu.vector_store %arg20[%c32_4, %c0_5], %4 {strides = array<i32>} : memref<40x128xf32, #tpu.memory_space<vmem>>, vector<8x128xf32>,
    %cst_6 = arith.constant 0.000000e+00 : f32
    %6 = vector.broadcast %cst_6 : f32 to vector<8x256xf32>
    %c32_7 = arith.constant 32 : index
    %c0_8 = arith.constant 0 : index
    %7 = vector.load %arg21[%c32_7, %c0_8] : memref<40x256xf32, #tpu.memory_space<vmem>>, vector<8x256xf32>
    tpu.vector_store %arg21[%c32_7, %c0_8], %6 {strides = array<i32>} : memref<40x256xf32, #tpu.memory_space<vmem>>, vector<8x256xf32>,
    %c0_9 = arith.constant 0 : index
    %c0_10 = arith.constant 0 : index
    %8 = vector.load %arg1[%c0_9, %c0_10] : memref<2x32xbf16, #tpu.memory_space<vmem>>, vector<2x32xbf16>
    %9 = arith.extf %8 : vector<2x32xbf16> to vector<2x32xf32>
    %c0_11 = arith.constant 0 : index
    %c0_12 = arith.constant 0 : index
    %10 = vector.load %arg0[%c0_11, %c0_12] : memref<40x1xf32, #tpu.memory_space<vmem>>, vector<32x1xf32>
    %c1 = arith.constant 1 : index
    %c0_13 = arith.constant 0 : index
    %11 = vector.load %arg0[%c1, %c0_13] : memref<40x1xf32, #tpu.memory_space<vmem>>, vector<32x1xf32>
    %12 = vector.extract_strided_slice %9 {offsets = [0, 0], sizes = [1, 32], strides = [1, 1]} : vector<2x32xf32> to vector<1x32xf32>
    %13 = vector.broadcast %10 : vector<32x1xf32> to vector<32x32xf32>
    %14 = vector.broadcast %12 : vector<1x32xf32> to vector<32x32xf32>
    %15 = arith.mulf %13, %14 : vector<32x32xf32>
    %16 = vector.extract_strided_slice %9 {offsets = [1, 0], sizes = [1, 32], strides = [1, 1]} : vector<2x32xf32> to vector<1x32xf32>
    %17 = vector.broadcast %11 : vector<32x1xf32> to vector<32x32xf32>
    %18 = vector.broadcast %16 : vector<1x32xf32> to vector<32x32xf32>
    %19 = arith.mulf %17, %18 : vector<32x32xf32>
    %20 = arith.addf %15, %19 : vector<32x32xf32>
    %c0_14 = arith.constant 0 : index
    %c0_15 = arith.constant 0 : index
    %21 = vector.load %arg2[%c0_14, %c0_15] : memref<1x32xf32, #tpu.memory_space<vmem>>, vector<1x32xf32>
    %22 = vector.broadcast %21 : vector<1x32xf32> to vector<32x32xf32>
    %23 = arith.addf %20, %22 : vector<32x32xf32>
    %cst_16 = arith.constant 0.000000e+00 : f32
    %24 = vector.broadcast %cst_16 : f32 to vector<32x32xf32>
    %25 = arith.maximumf %23, %24 : vector<32x32xf32>
    %c0_17 = arith.constant 0 : index
    %c0_18 = arith.constant 0 : index
    %26 = vector.load %arg18[%c0_17, %c0_18] : memref<40x32xf32, #tpu.memory_space<vmem>>, vector<32x32xf32>
    tpu.vector_store %arg18[%c0_17, %c0_18], %25 {strides = array<i32>} : memref<40x32xf32, #tpu.memory_space<vmem>>, vector<32x32xf32>,
    %c0_19 = arith.constant 0 : index
    %c0_20 = arith.constant 0 : index
    %27 = vector.load %arg18[%c0_19, %c0_20] : memref<40x32xf32, #tpu.memory_space<vmem>>, vector<32x32xf32>
    %c4 = arith.constant 4 : index
    %c0_21 = arith.constant 0 : index
    %28 = vector.load %arg18[%c4, %c0_21] : memref<40x32xf32, #tpu.memory_space<vmem>>, vector<32x32xf32>
    %c0_22 = arith.constant 0 : index
    %c0_23 = arith.constant 0 : index
    %29 = vector.load %arg3[%c0_22, %c0_23] : memref<64x64xbf16, #tpu.memory_space<vmem>>, vector<32x64xbf16>
    %30 = arith.extf %29 : vector<32x64xbf16> to vector<32x64xf32>
    %cst_24 = arith.constant dense<0.000000e+00> : vector<32x64xf32>
    %31 = tpu.matmul %27, %30, %cst_24 {dimension_numbers = #tpu.dot_dimension_numbers<[1], [0], [0], [1], [0, 0, 1, 1], [], []>} : vector<32x32xf32>, vector<32x64xf32>, vector<32x64xf32> -> vector<32x64xf32>
    %c32_25 = arith.constant 32 : index
    %c0_26 = arith.constant 0 : index
    %32 = vector.load %arg3[%c32_25, %c0_26] : memref<64x64xbf16, #tpu.memory_space<vmem>>, vector<32x64xbf16>
    %33 = arith.extf %32 : vector<32x64xbf16> to vector<32x64xf32>
    %cst_27 = arith.constant dense<0.000000e+00> : vector<32x64xf32>
    %34 = tpu.matmul %28, %33, %cst_27 {dimension_numbers = #tpu.dot_dimension_numbers<[1], [0], [0], [1], [0, 0, 1, 1], [], []>} : vector<32x32xf32>, vector<32x64xf32>, vector<32x64xf32> -> vector<32x64xf32>
    %35 = arith.addf %31, %34 : vector<32x64xf32>
    %c0_28 = arith.constant 0 : index
    %c0_29 = arith.constant 0 : index
    %36 = vector.load %arg4[%c0_28, %c0_29] : memref<1x64xf32, #tpu.memory_space<vmem>>, vector<1x64xf32>
    %37 = vector.broadcast %36 : vector<1x64xf32> to vector<32x64xf32>
    %38 = arith.addf %35, %37 : vector<32x64xf32>
    %cst_30 = arith.constant 0.000000e+00 : f32
    %39 = vector.broadcast %cst_30 : f32 to vector<32x64xf32>
    %40 = arith.maximumf %38, %39 : vector<32x64xf32>
    %c0_31 = arith.constant 0 : index
    %c0_32 = arith.constant 0 : index
    %41 = vector.load %arg19[%c0_31, %c0_32] : memref<40x64xf32, #tpu.memory_space<vmem>>, vector<32x64xf32>
    tpu.vector_store %arg19[%c0_31, %c0_32], %40 {strides = array<i32>} : memref<40x64xf32, #tpu.memory_space<vmem>>, vector<32x64xf32>,
    %c0_33 = arith.constant 0 : index
    %c0_34 = arith.constant 0 : index
    %42 = vector.load %arg19[%c0_33, %c0_34] : memref<40x64xf32, #tpu.memory_space<vmem>>, vector<32x64xf32>
    %c1_35 = arith.constant 1 : index
    %c0_36 = arith.constant 0 : index
    %43 = vector.load %arg19[%c1_35, %c0_36] : memref<40x64xf32, #tpu.memory_space<vmem>>, vector<32x64xf32>
    %c0_37 = arith.constant 0 : index
    %c0_38 = arith.constant 0 : index
    %44 = vector.load %arg5[%c0_37, %c0_38] : memref<128x128xbf16, #tpu.memory_space<vmem>>, vector<64x128xbf16>
    %45 = arith.extf %44 : vector<64x128xbf16> to vector<64x128xf32>
    %cst_39 = arith.constant dense<0.000000e+00> : vector<32x128xf32>
    %46 = tpu.matmul %42, %45, %cst_39 {dimension_numbers = #tpu.dot_dimension_numbers<[1], [0], [0], [1], [0, 0, 1, 1], [], []>} : vector<32x64xf32>, vector<64x128xf32>, vector<32x128xf32> -> vector<32x128xf32>
    %c64 = arith.constant 64 : index
    %c0_40 = arith.constant 0 : index
    %47 = vector.load %arg5[%c64, %c0_40] : memref<128x128xbf16, #tpu.memory_space<vmem>>, vector<64x128xbf16>
    %48 = arith.extf %47 : vector<64x128xbf16> to vector<64x128xf32>
    %cst_41 = arith.constant dense<0.000000e+00> : vector<32x128xf32>
    %49 = tpu.matmul %43, %48, %cst_41 {dimension_numbers = #tpu.dot_dimension_numbers<[1], [0], [0], [1], [0, 0, 1, 1], [], []>} : vector<32x64xf32>, vector<64x128xf32>, vector<32x128xf32> -> vector<32x128xf32>
    %50 = arith.addf %46, %49 : vector<32x128xf32>
    %c0_42 = arith.constant 0 : index
    %c0_43 = arith.constant 0 : index
    %51 = vector.load %arg6[%c0_42, %c0_43] : memref<1x128xf32, #tpu.memory_space<vmem>>, vector<1x128xf32>
    %52 = vector.broadcast %51 : vector<1x128xf32> to vector<32x128xf32>
    %53 = arith.addf %50, %52 : vector<32x128xf32>
    %cst_44 = arith.constant 0.000000e+00 : f32
    %54 = vector.broadcast %cst_44 : f32 to vector<32x128xf32>
    %55 = arith.maximumf %53, %54 : vector<32x128xf32>
    %c0_45 = arith.constant 0 : index
    %c0_46 = arith.constant 0 : index
    %56 = vector.load %arg20[%c0_45, %c0_46] : memref<40x128xf32, #tpu.memory_space<vmem>>, vector<32x128xf32>
    tpu.vector_store %arg20[%c0_45, %c0_46], %55 {strides = array<i32>} : memref<40x128xf32, #tpu.memory_space<vmem>>, vector<32x128xf32>,
    %c0_47 = arith.constant 0 : index
    %c0_48 = arith.constant 0 : index
    %57 = vector.load %arg20[%c0_47, %c0_48] : memref<40x128xf32, #tpu.memory_space<vmem>>, vector<32x128xf32>
    %c4_49 = arith.constant 4 : index
    %c0_50 = arith.constant 0 : index
    %58 = vector.load %arg20[%c4_49, %c0_50] : memref<40x128xf32, #tpu.memory_space<vmem>>, vector<32x128xf32>
    %59 = tpu.concatenate %57, %58 in 1 : vector<32x128xf32>, vector<32x128xf32> -> vector<32x256xf32>
    %c0_51 = arith.constant 0 : index
    %c0_52 = arith.constant 0 : index
    %60 = vector.load %arg7[%c0_51, %c0_52] : memref<256x256xbf16, #tpu.memory_space<vmem>>, vector<256x256xbf16>
    %61 = arith.extf %60 : vector<256x256xbf16> to vector<256x256xf32>
    %cst_53 = arith.constant dense<0.000000e+00> : vector<32x256xf32>
    %62 = tpu.matmul %59, %61, %cst_53 {dimension_numbers = #tpu.dot_dimension_numbers<[1], [0], [0], [1], [0, 0, 1, 1], [], []>} : vector<32x256xf32>, vector<256x256xf32>, vector<32x256xf32> -> vector<32x256xf32>
    %c0_54 = arith.constant 0 : index
    %c0_55 = arith.constant 0 : index
    %63 = vector.load %arg8[%c0_54, %c0_55] : memref<1x256xf32, #tpu.memory_space<vmem>>, vector<1x256xf32>
    %64 = vector.broadcast %63 : vector<1x256xf32> to vector<32x256xf32>
    %65 = arith.addf %62, %64 : vector<32x256xf32>
    %cst_56 = arith.constant 0.000000e+00 : f32
    %66 = vector.broadcast %cst_56 : f32 to vector<32x256xf32>
    %67 = arith.maximumf %65, %66 : vector<32x256xf32>
    %c0_57 = arith.constant 0 : index
    %c0_58 = arith.constant 0 : index
    %68 = vector.load %arg21[%c0_57, %c0_58] : memref<40x256xf32, #tpu.memory_space<vmem>>, vector<32x256xf32>
    tpu.vector_store %arg21[%c0_57, %c0_58], %67 {strides = array<i32>} : memref<40x256xf32, #tpu.memory_space<vmem>>, vector<32x256xf32>,
    %c0_59 = arith.constant 0 : index
    %c0_60 = arith.constant 0 : index
    %69 = vector.load %arg21[%c0_59, %c0_60] : memref<40x256xf32, #tpu.memory_space<vmem>>, vector<32x256xf32>
    %c1_61 = arith.constant 1 : index
    %c0_62 = arith.constant 0 : index
    %70 = vector.load %arg21[%c1_61, %c0_62] : memref<40x256xf32, #tpu.memory_space<vmem>>, vector<32x256xf32>
    %71 = tpu.concatenate %69, %70 in 1 : vector<32x256xf32>, vector<32x256xf32> -> vector<32x512xf32>
    %c0_63 = arith.constant 0 : index
    %c0_64 = arith.constant 0 : index
    %72 = vector.load %arg9[%c0_63, %c0_64] : memref<512x128xbf16, #tpu.memory_space<vmem>>, vector<512x128xbf16>
    %73 = arith.extf %72 : vector<512x128xbf16> to vector<512x128xf32>
    %cst_65 = arith.constant dense<0.000000e+00> : vector<32x128xf32>
    %74 = tpu.matmul %71, %73, %cst_65 {dimension_numbers = #tpu.dot_dimension_numbers<[1], [0], [0], [1], [0, 0, 1, 1], [], []>} : vector<32x512xf32>, vector<512x128xf32>, vector<32x128xf32> -> vector<32x128xf32>
    %c0_66 = arith.constant 0 : index
    %c0_67 = arith.constant 0 : index
    %75 = vector.load %arg10[%c0_66, %c0_67] : memref<1x128xf32, #tpu.memory_space<vmem>>, vector<1x128xf32>
    %76 = vector.broadcast %75 : vector<1x128xf32> to vector<32x128xf32>
    %77 = arith.addf %74, %76 : vector<32x128xf32>
    %cst_68 = arith.constant 0.000000e+00 : f32
    %78 = vector.broadcast %cst_68 : f32 to vector<32x128xf32>
    %79 = arith.maximumf %77, %78 : vector<32x128xf32>
    %c0_69 = arith.constant 0 : index
    %c0_70 = arith.constant 0 : index
    %80 = vector.load %arg22[%c0_69, %c0_70] : memref<40x128xf32, #tpu.memory_space<vmem>>, vector<32x128xf32>
    tpu.vector_store %arg22[%c0_69, %c0_70], %79 {strides = array<i32>} : memref<40x128xf32, #tpu.memory_space<vmem>>, vector<32x128xf32>,
    %c0_71 = arith.constant 0 : index
    %c0_72 = arith.constant 0 : index
    %81 = tpu.strided_load %arg22[%c0_71, %c0_72] {strides = array<i32: 16, 1>} : memref<40x128xf32, #tpu.memory_space<vmem>>, vector<2x128xf32>
    %c4_73 = arith.constant 4 : index
    %c0_74 = arith.constant 0 : index
    %82 = tpu.strided_load %arg22[%c4_73, %c0_74] {strides = array<i32: 16, 1>} : memref<40x128xf32, #tpu.memory_space<vmem>>, vector<2x128xf32>
    %83 = tpu.concatenate %81, %82 in 1 : vector<2x128xf32>, vector<2x128xf32> -> vector<2x256xf32>
    %c0_75 = arith.constant 0 : index
    %c0_76 = arith.constant 0 : index
    %84 = vector.load %arg11[%c0_75, %c0_76] : memref<256x64xbf16, #tpu.memory_space<vmem>>, vector<256x64xbf16>
    %85 = arith.extf %84 : vector<256x64xbf16> to vector<256x64xf32>
    %cst_77 = arith.constant dense<0.000000e+00> : vector<2x64xf32>
    %86 = tpu.matmul %83, %85, %cst_77 {dimension_numbers = #tpu.dot_dimension_numbers<[1], [0], [0], [1], [0, 0, 1, 1], [], []>} : vector<2x256xf32>, vector<256x64xf32>, vector<2x64xf32> -> vector<2x64xf32>
    %c0_78 = arith.constant 0 : index
    %c0_79 = arith.constant 0 : index
    %87 = vector.load %arg12[%c0_78, %c0_79] : memref<1x64xf32, #tpu.memory_space<vmem>>, vector<1x64xf32>
    %88 = vector.broadcast %87 : vector<1x64xf32> to vector<2x64xf32>
    %89 = arith.addf %86, %88 : vector<2x64xf32>
    %cst_80 = arith.constant 0.000000e+00 : f32
    %90 = vector.broadcast %cst_80 : f32 to vector<2x64xf32>
    %91 = arith.maximumf %89, %90 : vector<2x64xf32>
    %c0_81 = arith.constant 0 : index
    %c0_82 = arith.constant 0 : index
    %92 = vector.load %arg13[%c0_81, %c0_82] : memref<64x16xbf16, #tpu.memory_space<vmem>>, vector<64x16xbf16>
    %93 = arith.extf %92 : vector<64x16xbf16> to vector<64x16xf32>
    %cst_83 = arith.constant dense<0.000000e+00> : vector<2x16xf32>
    %94 = tpu.matmul %91, %93, %cst_83 {dimension_numbers = #tpu.dot_dimension_numbers<[1], [0], [0], [1], [0, 0, 1, 1], [], []>} : vector<2x64xf32>, vector<64x16xf32>, vector<2x16xf32> -> vector<2x16xf32>
    %c0_84 = arith.constant 0 : index
    %c0_85 = arith.constant 0 : index
    %95 = vector.load %arg14[%c0_84, %c0_85] : memref<1x16xf32, #tpu.memory_space<vmem>>, vector<1x16xf32>
    %96 = vector.broadcast %95 : vector<1x16xf32> to vector<2x16xf32>
    %97 = arith.addf %94, %96 : vector<2x16xf32>
    %cst_86 = arith.constant 0.000000e+00 : f32
    %98 = vector.broadcast %cst_86 : f32 to vector<2x16xf32>
    %99 = arith.maximumf %97, %98 : vector<2x16xf32>
    %c0_87 = arith.constant 0 : index
    %c0_88 = arith.constant 0 : index
    %100 = vector.load %arg15[%c0_87, %c0_88] : memref<16x4xbf16, #tpu.memory_space<vmem>>, vector<16x4xbf16>
    %101 = arith.extf %100 : vector<16x4xbf16> to vector<16x4xf32>
    %cst_89 = arith.constant dense<0.000000e+00> : vector<2x4xf32>
    %102 = tpu.matmul %99, %101, %cst_89 {dimension_numbers = #tpu.dot_dimension_numbers<[1], [0], [0], [1], [0, 0, 1, 1], [], []>} : vector<2x16xf32>, vector<16x4xf32>, vector<2x4xf32> -> vector<2x4xf32>
    %c0_90 = arith.constant 0 : index
    %c0_91 = arith.constant 0 : index
    %103 = vector.load %arg16[%c0_90, %c0_91] : memref<1x4xf32, #tpu.memory_space<vmem>>, vector<1x4xf32>
    %104 = vector.broadcast %103 : vector<1x4xf32> to vector<2x4xf32>
    %105 = arith.addf %102, %104 : vector<2x4xf32>
    %cst_92 = arith.constant dense<0xFF800000> : vector<2xf32>
    %106 = vector.multi_reduction <maximumf>, %105, %cst_92 [1] : vector<2x4xf32> to vector<2xf32>
    %107 = vector.shape_cast %106 : vector<2xf32> to vector<2x1xf32>
    %108 = vector.broadcast %107 : vector<2x1xf32> to vector<2x4xf32>
    %109 = arith.subf %105, %108 : vector<2x4xf32>
    %110 = math.exp %109 : vector<2x4xf32>
    %cst_93 = arith.constant dense<0.000000e+00> : vector<2xf32>
    %111 = vector.multi_reduction <add>, %110, %cst_93 [1] : vector<2x4xf32> to vector<2xf32>
    %112 = vector.shape_cast %111 : vector<2xf32> to vector<2x1xf32>
    %113 = math.log %112 : vector<2x1xf32>
    %114 = vector.broadcast %113 : vector<2x1xf32> to vector<2x4xf32>
    %115 = arith.subf %109, %114 : vector<2x4xf32>
    %c0_94 = arith.constant 0 : index
    %c0_95 = arith.constant 0 : index
    %116 = vector.load %arg17[%c0_94, %c0_95] : memref<2x4xf32, #tpu.memory_space<vmem>>, vector<2x4xf32>
    tpu.vector_store %arg17[%c0_94, %c0_95], %115 {strides = array<i32>} : memref<2x4xf32, #tpu.memory_space<vmem>>, vector<2x4xf32>,
    return
  }
}

</mosaic_0001>

<llo_original>
// kernel: tpu_custom_call.1
$region0: #{tpu_custom_call.1}
  #allocation0 [shape = 'u32[]', space=smem, size = 0x4, offset = 0x4, fixed_abs, tag = 'smem constant byte address 0x4 - core index']
  #allocation1 [shape = 'u32[72,128]{1,0:T(1,128)}', space=vmem, size = 0x9000, scoped, tag = 'internal scratch']
  #allocation2 [shape = 'f32[40,32]{1,0:T(8,128)}', space=vmem, size = 0x5000, scoped, tag = 'scratch operand']
  #allocation3 [shape = 'f32[40,64]{1,0:T(8,128)}', space=vmem, size = 0x5000, scoped, tag = 'scratch operand']
  #allocation4 [shape = 'f32[40,128]{1,0:T(8,128)}', space=vmem, size = 0x5000, scoped, tag = 'scratch operand']
  #allocation5 [shape = 'f32[40,256]{1,0:T(8,128)}', space=vmem, size = 0xa000, scoped, tag = 'scratch operand']
  #allocation6 [shape = 'f32[40,128]{1,0:T(8,128)}', space=vmem, size = 0x5000, scoped, tag = 'scratch operand']
  %s0 = inlined_call_operand.vmem [shape: f32[40,1], index: 0, kind: input, shape index: {}]
  %s1 = inlined_call_operand.hbm [shape: bf16[2,32], index: 1, kind: input, shape index: {}]
  %s2 = inlined_call_operand.hbm [shape: f32[1,32], index: 2, kind: input, shape index: {}]
  %s3 = inlined_call_operand.vmem [shape: bf16[64,64], index: 3, kind: input, shape index: {}]
  %s4 = inlined_call_operand.hbm [shape: f32[1,64], index: 4, kind: input, shape index: {}]
  %s5 = inlined_call_operand.hbm [shape: bf16[128,128], index: 5, kind: input, shape index: {}]
  %s6 = inlined_call_operand.hbm [shape: f32[1,128], index: 6, kind: input, shape index: {}]
  %s7 = inlined_call_operand.vmem [shape: bf16[256,256], index: 7, kind: input, shape index: {}]
  %s8 = inlined_call_operand.hbm [shape: f32[1,256], index: 8, kind: input, shape index: {}]
  %s9 = inlined_call_operand.hbm [shape: bf16[512,128], index: 9, kind: input, shape index: {}]
  %s10 = inlined_call_operand.hbm [shape: f32[1,128], index: 10, kind: input, shape index: {}]
  %s11 = inlined_call_operand.vmem [shape: bf16[256,64], index: 11, kind: input, shape index: {}]
  %s12 = inlined_call_operand.vmem [shape: f32[1,64], index: 12, kind: input, shape index: {}]
  %s13 = inlined_call_operand.vmem [shape: bf16[64,16], index: 13, kind: input, shape index: {}]
  %s14 = inlined_call_operand.vmem [shape: f32[1,16], index: 14, kind: input, shape index: {}]
  %s15 = inlined_call_operand.vmem [shape: bf16[16,4], index: 15, kind: input, shape index: {}]
  %s16 = inlined_call_operand.vmem [shape: f32[1,4], index: 16, kind: input, shape index: {}]
  %s17 = inlined_call_operand.hbm [shape: f32[2,4], index: 17, kind: output, shape index: {}]
  %s18 = sld [smem:[#allocation0]]
  $region110: #{tpu_custom_call.1} parent=0
    _
  %s20 = ssub.s32 1, %s18
  %s21 = scalar_select 0, %s20, %s18
  $region1: #{tpu_custom_call.1} parent=0
    #allocation7 [shape = 'u8[512]{0}', space=vmem, size = 0x400, scoped, tag = 'input window, operand 1, single buffered']
    #allocation8 [shape = 's32[1]{0}', space=sflag, size = 0x4, scoped, tag = 'scoped memory for tpu_custom_call.1']
    #allocation9 [shape = 's32[1]{0}', space=sflag, size = 0x4, scoped, tag = 'scoped memory for tpu_custom_call.1']
    #allocation10 [shape = 'u8[512]{0}', space=vmem, size = 0x400, scoped, tag = 'input window, operand 2, single buffered']
    #allocation11 [shape = 's32[1]{0}', space=sflag, size = 0x4, scoped, tag = 'scoped memory for tpu_custom_call.1']
    #allocation12 [shape = 'u8[512]{0}', space=vmem, size = 0x400, scoped, tag = 'input window, operand 4, single buffered']
    #allocation13 [shape = 'u8[32768]{0}', space=vmem, size = 0x8000, scoped, tag = 'input window, operand 5, single buffered']
    #allocation14 [shape = 's32[1]{0}', space=sflag, size = 0x4, scoped, tag = 'scoped memory for tpu_custom_call.1']
    #allocation15 [shape = 'u8[512]{0}', space=vmem, size = 0x400, scoped, tag = 'input window, operand 6, single buffered']
    #allocation16 [shape = 'u8[1024]{0}', space=vmem, size = 0x400, scoped, tag = 'input window, operand 8, single buffered']
    #allocation17 [shape = 's32[1]{0}', space=sflag, size = 0x4, scoped, tag = 'scoped memory for tpu_custom_call.1']
    #allocation18 [shape = 'u8[131072]{0}', space=vmem, size = 0x20000, scoped, tag = 'input window, operand 9, single buffered']
    #allocation19 [shape = 'u8[512]{0}', space=vmem, size = 0x400, scoped, tag = 'input window, operand 10, single buffered']
    #allocation20 [shape = 's32[1]{0}', space=sflag, size = 0x4, scoped, tag = 'scoped memory for tpu_custom_call.1']
    #allocation21 [shape = 'u8[1024]{0}', space=vmem, size = 0x400, scoped, tag = 'output window, operand 0, single buffered']
    %22 = vsyncpa [#allocation8], 0
    %23 = vsyncpa [#allocation11], 0
    %24 = vsyncpa [#allocation14], 0
    %25 = vsyncpa [#allocation17], 0
    %26 = vsyncpa [#allocation20], 0
    %27 = vsyncpa [#allocation9], 0
    // Predicated region
    $region2: #{tpu_custom_call.1} parent=1 // pred_check
      _
    $region3: #{tpu_custom_call.1} parent=1 // pred_check_branch
      %29 = sbr.rel (0) target = $region5
    $region4: #{tpu_custom_call.1} parent=1 // pred_region
      _
    $region5: #{tpu_custom_call.1} parent=1 // pred_fallthru
      _
    // Predicated region
    $region6: #{tpu_custom_call.1} parent=1 // pred_check
      _
    $region7: #{tpu_custom_call.1} parent=1 // pred_check_branch
      %31 = sbr.rel (0) target = $region9
    $region8: #{tpu_custom_call.1} parent=1 // pred_region
      %33 = vsyncadd [#allocation8], 0
      %s35 = sshll.u32 %s1, 4
      %s36 = int_to_ptr.hbm [resolvable:$true] %s35
      %s37 = sshll.u32 [#allocation7], 4
      %s38 = int_to_ptr.vmem [resolvable:$true] %s37
      %40 = dma.hbm_to_vmem [thread:$0]  %s36, 16, %s38, [#allocation8]
    $region9: #{tpu_custom_call.1} parent=1 // pred_fallthru
      _
    // Predicated region
    $region10: #{tpu_custom_call.1} parent=1 // pred_check
      _
    $region11: #{tpu_custom_call.1} parent=1 // pred_check_branch
      %42 = sbr.rel (0) target = $region13
    $region12: #{tpu_custom_call.1} parent=1 // pred_region
      %44 = vsyncadd [#allocation11], 0
      %s46 = sshll.u32 %s2, 4
      %s47 = int_to_ptr.hbm [resolvable:$true] %s46
      %s48 = sshll.u32 [#allocation10], 4
      %s49 = int_to_ptr.vmem [resolvable:$true] %s48
      %51 = dma.hbm_to_vmem [thread:$0]  %s47, 16, %s49, [#allocation11]
    $region13: #{tpu_custom_call.1} parent=1 // pred_fallthru
      _
    // Predicated region
    $region14: #{tpu_custom_call.1} parent=1 // pred_check
      _
    $region15: #{tpu_custom_call.1} parent=1 // pred_check_branch
      %53 = sbr.rel (0) target = $region17
    $region16: #{tpu_custom_call.1} parent=1 // pred_region
      _
    $region17: #{tpu_custom_call.1} parent=1 // pred_fallthru
      _
    // Predicated region
    $region18: #{tpu_custom_call.1} parent=1 // pred_check
      _
    $region19: #{tpu_custom_call.1} parent=1 // pred_check_branch
      %55 = sbr.rel (0) target = $region21
    $region20: #{tpu_custom_call.1} parent=1 // pred_region
      %57 = vsyncadd [#allocation11], 0
      %s59 = sshll.u32 %s4, 4
      %s60 = int_to_ptr.hbm [resolvable:$true] %s59
      %s61 = sshll.u32 [#allocation12], 4
      %s62 = int_to_ptr.vmem [resolvable:$true] %s61
      %64 = dma.hbm_to_vmem [thread:$0]  %s60, 16, %s62, [#allocation11]
    $region21: #{tpu_custom_call.1} parent=1 // pred_fallthru
      _
    // Predicated region
    $region22: #{tpu_custom_call.1} parent=1 // pred_check
      _
    $region23: #{tpu_custom_call.1} parent=1 // pred_check_branch
      %66 = sbr.rel (0) target = $region25
    $region24: #{tpu_custom_call.1} parent=1 // pred_region
      %68 = vsyncadd [#allocation14], 0
      %s69 = sshll.u32 %s5, 4
      %s70 = int_to_ptr.hbm [resolvable:$true] %s69
      %s71 = sshll.u32 [#allocation13], 4
      %s72 = int_to_ptr.vmem [resolvable:$true] %s71
      %77 = dma.hbm_to_vmem [thread:$0]  %s70, 1024, %s72, [#allocation14], 64, 64, 4
    $region25: #{tpu_custom_call.1} parent=1 // pred_fallthru
      _
    // Predicated region
    $region26: #{tpu_custom_call.1} parent=1 // pred_check
      _
    $region27: #{tpu_custom_call.1} parent=1 // pred_check_branch
      %79 = sbr.rel (0) target = $region29
    $region28: #{tpu_custom_call.1} parent=1 // pred_region
      %81 = vsyncadd [#allocation14], 0
      %s83 = sshll.u32 %s6, 4
      %s84 = int_to_ptr.hbm [resolvable:$true] %s83
      %s85 = sshll.u32 [#allocation15], 4
      %s86 = int_to_ptr.vmem [resolvable:$true] %s85
      %88 = dma.hbm_to_vmem [thread:$0]  %s84, 16, %s86, [#allocation14]
    $region29: #{tpu_custom_call.1} parent=1 // pred_fallthru
      _
    // Predicated region
    $region30: #{tpu_custom_call.1} parent=1 // pred_check
      _
    $region31: #{tpu_custom_call.1} parent=1 // pred_check_branch
      %90 = sbr.rel (0) target = $region33
    $region32: #{tpu_custom_call.1} parent=1 // pred_region
      _
    $region33: #{tpu_custom_call.1} parent=1 // pred_fallthru
      _
    // Predicated region
    $region34: #{tpu_custom_call.1} parent=1 // pred_check
      _
    $region35: #{tpu_custom_call.1} parent=1 // pred_check_branch
      %92 = sbr.rel (0) target = $region37
    $region36: #{tpu_custom_call.1} parent=1 // pred_region
      %94 = vsyncadd [#allocation17], 0
      %s96 = sshll.u32 %s8, 4
      %s97 = int_to_ptr.hbm [resolvable:$true] %s96
      %s98 = sshll.u32 [#allocation16], 4
      %s99 = int_to_ptr.vmem [resolvable:$true] %s98
      %101 = dma.hbm_to_vmem [thread:$0]  %s97, 32, %s99, [#allocation17]
    $region37: #{tpu_custom_call.1} parent=1 // pred_fallthru
      _
    // Predicated region
    $region38: #{tpu_custom_call.1} parent=1 // pred_check
      _
    $region39: #{tpu_custom_call.1} parent=1 // pred_check_branch
      %103 = sbr.rel (0) target = $region41
    $region40: #{tpu_custom_call.1} parent=1 // pred_region
      %105 = vsyncadd [#allocation17], 0
      %s106 = sshll.u32 %s9, 4
      %s107 = int_to_ptr.hbm [resolvable:$true] %s106
      %s108 = sshll.u32 [#allocation18], 4
      %s109 = int_to_ptr.vmem [resolvable:$true] %s108
      %114 = dma.hbm_to_vmem [thread:$0]  %s107, 4096, %s109, [#allocation17], 64, 64, 4
    $region41: #{tpu_custom_call.1} parent=1 // pred_fallthru
      _
    // Predicated region
    $region42: #{tpu_custom_call.1} parent=1 // pred_check
      _
    $region43: #{tpu_custom_call.1} parent=1 // pred_check_branch
      %116 = sbr.rel (0) target = $region45
    $region44: #{tpu_custom_call.1} parent=1 // pred_region
      %118 = vsyncadd [#allocation20], 0
      %s120 = sshll.u32 %s10, 4
      %s121 = int_to_ptr.hbm [resolvable:$true] %s120
      %s122 = sshll.u32 [#allocation19], 4
      %s123 = int_to_ptr.vmem [resolvable:$true] %s122
      %125 = dma.hbm_to_vmem [thread:$0]  %s121, 16, %s123, [#allocation20]
    $region45: #{tpu_custom_call.1} parent=1 // pred_fallthru
      _
    // Predicated region
    $region46: #{tpu_custom_call.1} parent=1 // pred_check
      _
    $region47: #{tpu_custom_call.1} parent=1 // pred_check_branch
      %127 = sbr.rel (0) target = $region49
    $region48: #{tpu_custom_call.1} parent=1 // pred_region
      _
    $region49: #{tpu_custom_call.1} parent=1 // pred_fallthru
      _
    // Predicated region
    $region50: #{tpu_custom_call.1} parent=1 // pred_check
      _
    $region51: #{tpu_custom_call.1} parent=1 // pred_check_branch
      %129 = sbr.rel (0) target = $region53
    $region52: #{tpu_custom_call.1} parent=1 // pred_region
      _
    $region53: #{tpu_custom_call.1} parent=1 // pred_fallthru
      _
    // Predicated region
    $region54: #{tpu_custom_call.1} parent=1 // pred_check
      _
    $region55: #{tpu_custom_call.1} parent=1 // pred_check_branch
      %131 = sbr.rel (0) target = $region57
    $region56: #{tpu_custom_call.1} parent=1 // pred_region
      _
    $region57: #{tpu_custom_call.1} parent=1 // pred_fallthru
      _
    // Predicated region
    $region58: #{tpu_custom_call.1} parent=1 // pred_check
      _
    $region59: #{tpu_custom_call.1} parent=1 // pred_check_branch
      %133 = sbr.rel (0) target = $region61
    $region60: #{tpu_custom_call.1} parent=1 // pred_region
      _
    $region61: #{tpu_custom_call.1} parent=1 // pred_fallthru
      _
    // Predicated region
    $region62: #{tpu_custom_call.1} parent=1 // pred_check
      _
    $region63: #{tpu_custom_call.1} parent=1 // pred_check_branch
      %135 = sbr.rel (0) target = $region65
    $region64: #{tpu_custom_call.1} parent=1 // pred_region
      _
    $region65: #{tpu_custom_call.1} parent=1 // pred_fallthru
      _
    // Predicated region
    $region66: #{tpu_custom_call.1} parent=1 // pred_check
      _
    $region67: #{tpu_custom_call.1} parent=1 // pred_check_branch
      %137 = sbr.rel (0) target = $region69
    $region68: #{tpu_custom_call.1} parent=1 // pred_region
      _
    $region69: #{tpu_custom_call.1} parent=1 // pred_fallthru
      _
    // Predicated region
    $region70: #{tpu_custom_call.1} parent=1 // pred_check
      _
    $region71: #{tpu_custom_call.1} parent=1 // pred_check_branch
      %139 = sbr.rel (0) target = $region73
    $region72: #{tpu_custom_call.1} parent=1 // pred_region
      %141 = dma.done [#allocation8], 16
    $region73: #{tpu_custom_call.1} parent=1 // pred_fallthru
      _
    // Predicated region
    $region74: #{tpu_custom_call.1} parent=1 // pred_check
      _
    $region75: #{tpu_custom_call.1} parent=1 // pred_check_branch
      %143 = sbr.rel (0) target = $region77
    $region76: #{tpu_custom_call.1} parent=1 // pred_region
      %145 = dma.done [#allocation11], 16
    $region77: #{tpu_custom_call.1} parent=1 // pred_fallthru
      _
    // Predicated region
    $region78: #{tpu_custom_call.1} parent=1 // pred_check
      _
    $region79: #{tpu_custom_call.1} parent=1 // pred_check_branch
      %147 = sbr.rel (0) target = $region81
    $region80: #{tpu_custom_call.1} parent=1 // pred_region
      %149 = dma.done [#allocation11], 16
    $region81: #{tpu_custom_call.1} parent=1 // pred_fallthru
      _
    // Predicated region
    $region82: #{tpu_custom_call.1} parent=1 // pred_check
      _
    $region83: #{tpu_custom_call.1} parent=1 // pred_check_branch
      %151 = sbr.rel (0) target = $region85
    $region84: #{tpu_custom_call.1} parent=1 // pred_region
      %153 = dma.done [#allocation14], 1024
    $region85: #{tpu_custom_call.1} parent=1 // pred_fallthru
      _
    // Predicated region
    $region86: #{tpu_custom_call.1} parent=1 // pred_check
      _
    $region87: #{tpu_custom_call.1} parent=1 // pred_check_branch
      %155 = sbr.rel (0) target = $region89
    $region88: #{tpu_custom_call.1} parent=1 // pred_region
      %157 = dma.done [#allocation14], 16
    $region89: #{tpu_custom_call.1} parent=1 // pred_fallthru
      _
    // Predicated region
    $region90: #{tpu_custom_call.1} parent=1 // pred_check
      _
    $region91: #{tpu_custom_call.1} parent=1 // pred_check_branch
      %159 = sbr.rel (0) target = $region93
    $region92: #{tpu_custom_call.1} parent=1 // pred_region
      %161 = dma.done [#allocation17], 32
    $region93: #{tpu_custom_call.1} parent=1 // pred_fallthru
      _
    // Predicated region
    $region94: #{tpu_custom_call.1} parent=1 // pred_check
      _
    $region95: #{tpu_custom_call.1} parent=1 // pred_check_branch
      %163 = sbr.rel (0) target = $region97
    $region96: #{tpu_custom_call.1} parent=1 // pred_region
      %165 = dma.done [#allocation17], 4096
    $region97: #{tpu_custom_call.1} parent=1 // pred_fallthru
      _
    // Predicated region
    $region98: #{tpu_custom_call.1} parent=1 // pred_check
      _
    $region99: #{tpu_custom_call.1} parent=1 // pred_check_branch
      %167 = sbr.rel (0) target = $region101
    $region100: #{tpu_custom_call.1} parent=1 // pred_region
      %169 = dma.done [#allocation20], 16
    $region101: #{tpu_custom_call.1} parent=1 // pred_fallthru
      _
    %vm170 = vcmask 261120
    %171 = vst.msk [vmem:[#allocation2 + $0x20] sm:$0xff] %vm170, 0.0
    %vm172 = vcmask 523264
    %173 = vst.msk [vmem:[#allocation3 + $0x20] sm:$0xff] %vm172, 0.0
    %174 = vst [vmem:[#allocation4 + $0x20] sm:$0xff] 0.0
    %175 = vst [vmem:[#allocation5 + $0x40] sm:$0xff] 0.0
    %176 = vst [vmem:[#allocation5 + $0x48] sm:$0xff] 0.0
    %v177 = vld [vmem:[#allocation7] sm:$0x1]
    %v178 = vunpack.c.l.bf16 %v177
    %v179 = vld [vmem:[%s0] sm:$0xff]
    %v180 = vld [vmem:[%s0 + $0x8] sm:$0xff]
    %v181 = vld [vmem:[%s0 + $0x10] sm:$0xff]
    %v182 = vld [vmem:[%s0 + $0x18] sm:$0xff]
    %v183 = vld [vmem:[%s0 + $0x1] sm:$0xff]
    %v184 = vld [vmem:[%s0 + $0x9] sm:$0xff]
    %v185 = vld [vmem:[%s0 + $0x11] sm:$0xff]
    %v186 = vld [vmem:[%s0 + $0x19] sm:$0xff]
    %188 = vset.pattern.permute.xlu0 0
    %189 = vperm.xlu0 %188, %v179
    %v190 = vpop.permute.xlu0 %189
    %193 = vset.pattern.permute.xlu0 0
    %194 = vperm.xlu0 %193, %v180
    %v195 = vpop.permute.xlu0 %194
    %198 = vset.pattern.permute.xlu0 0
    %199 = vperm.xlu0 %198, %v181
    %v200 = vpop.permute.xlu0 %199
    %203 = vset.pattern.permute.xlu0 0
    %204 = vperm.xlu0 %203, %v182
    %v205 = vpop.permute.xlu0 %204
    %v207 = vperm.slane %v178, 0
    %v208 = vmul.f32 %v190, %v207
    %v209 = vmul.f32 %v195, %v207
    %v210 = vmul.f32 %v200, %v207
    %v211 = vmul.f32 %v205, %v207
    %213 = vset.pattern.permute.xlu0 0
    %214 = vperm.xlu0 %213, %v183
    %v215 = vpop.permute.xlu0 %214
    %218 = vset.pattern.permute.xlu0 0
    %219 = vperm.xlu0 %218, %v184
    %v220 = vpop.permute.xlu0 %219
    %223 = vset.pattern.permute.xlu0 0
    %224 = vperm.xlu0 %223, %v185
    %v225 = vpop.permute.xlu0 %224
    %228 = vset.pattern.permute.xlu0 0
    %229 = vperm.xlu0 %228, %v186
    %v230 = vpop.permute.xlu0 %229
    %v232 = vperm.slane %v178, 1
    %v233 = vmul.f32 %v215, %v232
    %v234 = vmul.f32 %v220, %v232
    %v235 = vmul.f32 %v225, %v232
    %v236 = vmul.f32 %v230, %v232
    %v237 = vadd.f32 %v208, %v233
    %v238 = vadd.f32 %v209, %v234
    %v239 = vadd.f32 %v210, %v235
    %v240 = vadd.f32 %v211, %v236
    %v241 = vld [vmem:[#allocation10] sm:$0x1]
    %v243 = vperm.slane %v241, 0
    %v245 = vadd.f32 %v237, %v243
    %v246 = vadd.f32 %v238, %v243
    %v247 = vadd.f32 %v239, %v243
    %v248 = vadd.f32 %v240, %v243
    %v249 = vmax.f32 %v245, 0.0
    %v250 = vmax.f32 %v246, 0.0
    %v251 = vmax.f32 %v247, 0.0
    %v252 = vmax.f32 %v248, 0.0
    %253 = vst.msk [vmem:[#allocation2] sm:$0xff] %vm170, %v249
    %254 = vst.msk [vmem:[#allocation2 + $0x8] sm:$0xff] %vm170, %v250
    %255 = vst.msk [vmem:[#allocation2 + $0x10] sm:$0xff] %vm170, %v251
    %256 = vst.msk [vmem:[#allocation2 + $0x18] sm:$0xff] %vm170, %v252
    %v257 = vld [vmem:[#allocation2] sm:$0xff]
    %v258 = vld [vmem:[#allocation2 + $0x8] sm:$0xff]
    %v259 = vld [vmem:[#allocation2 + $0x10] sm:$0xff]
    %v260 = vld [vmem:[#allocation2 + $0x18] sm:$0xff]
    %v261 = vld [vmem:[#allocation2 + $0x4] sm:$0xff]
    %v262 = vld [vmem:[#allocation2 + $0xc] sm:$0xff]
    %v263 = vld [vmem:[#allocation2 + $0x14] sm:$0xff]
    %v264 = vld [vmem:[#allocation2 + $0x1c] sm:$0xff]
    %v265 = vld [vmem:[%s3] sm:$0xf]
    %v266 = vld [vmem:[%s3 + $0x4] sm:$0xf]
    %v267 = vld [vmem:[%s3 + $0x8] sm:$0xf]
    %v268 = vld [vmem:[%s3 + $0xc] sm:$0xf]
    %v269 = vunpack.c.l.bf16 %v265
    %v270 = vunpack.c.l.bf16 %v266
    %v271 = vunpack.c.l.bf16 %v267
    %v272 = vunpack.c.l.bf16 %v268
    %v273 = vld [vmem:[%s3 + $0x10] sm:$0xf]
    %v274 = vld [vmem:[%s3 + $0x14] sm:$0xf]
    %v275 = vld [vmem:[%s3 + $0x18] sm:$0xf]
    %v276 = vld [vmem:[%s3 + $0x1c] sm:$0xf]
    %v277 = vunpack.c.l.bf16 %v273
    %v278 = vunpack.c.l.bf16 %v274
    %v279 = vunpack.c.l.bf16 %v275
    %v280 = vunpack.c.l.bf16 %v276
    %v282 = vsel %vm170, %v261, 0
    %v285 = vsel %vm170, %v262, 0
    %v288 = vsel %vm170, %v263, 0
    %v291 = vsel %vm170, %v264, 0
    %293 = vmatpush.msra.mxu0 0.0
    %294 = vmatpush.msra.mxu0 0.0
    %295 = vmatpush.msra.mxu0 0.0
    %296 = vmatpush.msra.mxu0 0.0
    %297 = vmatpush.msra.mxu0 0.0
    %298 = vmatpush.msra.mxu0 0.0
    %299 = vmatpush.msra.mxu0 0.0
    %300 = vmatpush.msra.mxu0 0.0
    %301 = vmatpush.msra.mxu0 0.0
    %302 = vmatpush.msra.mxu0 0.0
    %303 = vmatpush.msra.mxu0 0.0
    %304 = vmatpush.msra.mxu0 0.0
    %305 = vmatpush.msra.mxu0 %v280
    %306 = vmatpush.msra.mxu0 %v279
    %307 = vmatpush.msra.mxu0 %v278
    %308 = vmatpush.msra.mxu0 %v277
    %309 = vmatmul.f32.gmra.mxu0 %v282
    %v310 = vpop.f32.mrf.mxu0
    %v311 = vadd.f32 0.0, %v310
    %312 = vmatmul.f32.gmra.mxu0 %v285
    %v313 = vpop.f32.mrf.mxu0
    %v314 = vadd.f32 0.0, %v313
    %315 = vmatmul.f32.gmra.mxu0 %v288
    %v316 = vpop.f32.mrf.mxu0
    %v317 = vadd.f32 0.0, %v316
    %318 = vmatmul.f32.gmra.mxu0 %v291
    %v319 = vpop.f32.mrf.mxu0
    %v320 = vadd.f32 0.0, %v319
    %321 = vdwg.mxu0
    %v323 = vsel %vm170, %v257, 0
    %v326 = vsel %vm170, %v258, 0
    %v329 = vsel %vm170, %v259, 0
    %v332 = vsel %vm170, %v260, 0
    %334 = vmatpush.msra.mxu0 0.0
    %335 = vmatpush.msra.mxu0 0.0
    %336 = vmatpush.msra.mxu0 0.0
    %337 = vmatpush.msra.mxu0 0.0
    %338 = vmatpush.msra.mxu0 0.0
    %339 = vmatpush.msra.mxu0 0.0
    %340 = vmatpush.msra.mxu0 0.0
    %341 = vmatpush.msra.mxu0 0.0
    %342 = vmatpush.msra.mxu0 0.0
    %343 = vmatpush.msra.mxu0 0.0
    %344 = vmatpush.msra.mxu0 0.0
    %345 = vmatpush.msra.mxu0 0.0
    %346 = vmatpush.msra.mxu0 %v272
    %347 = vmatpush.msra.mxu0 %v271
    %348 = vmatpush.msra.mxu0 %v270
    %349 = vmatpush.msra.mxu0 %v269
    %350 = vmatmul.f32.gmra.mxu0 %v323
    %v351 = vpop.f32.mrf.mxu0
    %v352 = vadd.f32 %v311, %v351
    %353 = vmatmul.f32.gmra.mxu0 %v326
    %v354 = vpop.f32.mrf.mxu0
    %v355 = vadd.f32 %v314, %v354
    %356 = vmatmul.f32.gmra.mxu0 %v329
    %v357 = vpop.f32.mrf.mxu0
    %v358 = vadd.f32 %v317, %v357
    %359 = vmatmul.f32.gmra.mxu0 %v332
    %v360 = vpop.f32.mrf.mxu0
    %v361 = vadd.f32 %v320, %v360
    %362 = vdwg.mxu0
    %v363 = vld [vmem:[#allocation12] sm:$0x1]
    %v365 = vperm.slane %v363, 0
    %v367 = vadd.f32 %v352, %v365
    %v368 = vadd.f32 %v355, %v365
    %v369 = vadd.f32 %v358, %v365
    %v370 = vadd.f32 %v361, %v365
    %v371 = vmax.f32 %v367, 0.0
    %v372 = vmax.f32 %v368, 0.0
    %v373 = vmax.f32 %v369, 0.0
    %v374 = vmax.f32 %v370, 0.0
    %375 = vst.msk [vmem:[#allocation3] sm:$0xff] %vm172, %v371
    %376 = vst.msk [vmem:[#allocation3 + $0x8] sm:$0xff] %vm172, %v372
    %377 = vst.msk [vmem:[#allocation3 + $0x10] sm:$0xff] %vm172, %v373
    %378 = vst.msk [vmem:[#allocation3 + $0x18] sm:$0xff] %vm172, %v374
    %v379 = vld [vmem:[#allocation3] sm:$0xff]
    %v380 = vld [vmem:[#allocation3 + $0x8] sm:$0xff]
    %v381 = vld [vmem:[#allocation3 + $0x10] sm:$0xff]
    %v382 = vld [vmem:[#allocation3 + $0x18] sm:$0xff]
    %v383 = vld [vmem:[#allocation3 + $0x1] sm:$0xff]
    %v384 = vld [vmem:[#allocation3 + $0x9] sm:$0xff]
    %v385 = vld [vmem:[#allocation3 + $0x11] sm:$0xff]
    %v386 = vld [vmem:[#allocation3 + $0x19] sm:$0xff]
    %v387 = vld [vmem:[#allocation13] sm:$0xf]
    %v388 = vld [vmem:[#allocation13 + $0x4] sm:$0xf]
    %v389 = vld [vmem:[#allocation13 + $0x8] sm:$0xf]
    %v390 = vld [vmem:[#allocation13 + $0xc] sm:$0xf]
    %v391 = vld [vmem:[#allocation13 + $0x10] sm:$0xf]
    %v392 = vld [vmem:[#allocation13 + $0x14] sm:$0xf]
    %v393 = vld [vmem:[#allocation13 + $0x18] sm:$0xf]
    %v394 = vld [vmem:[#allocation13 + $0x1c] sm:$0xf]
    %v395 = vunpack.c.l.bf16 %v387
    %v396 = vunpack.c.l.bf16 %v388
    %v397 = vunpack.c.l.bf16 %v389
    %v398 = vunpack.c.l.bf16 %v390
    %v399 = vunpack.c.l.bf16 %v391
    %v400 = vunpack.c.l.bf16 %v392
    %v401 = vunpack.c.l.bf16 %v393
    %v402 = vunpack.c.l.bf16 %v394
    %v403 = vld [vmem:[#allocation13 + $0x20] sm:$0xf]
    %v404 = vld [vmem:[#allocation13 + $0x24] sm:$0xf]
    %v405 = vld [vmem:[#allocation13 + $0x28] sm:$0xf]
    %v406 = vld [vmem:[#allocation13 + $0x2c] sm:$0xf]
    %v407 = vld [vmem:[#allocation13 + $0x30] sm:$0xf]
    %v408 = vld [vmem:[#allocation13 + $0x34] sm:$0xf]
    %v409 = vld [vmem:[#allocation13 + $0x38] sm:$0xf]
    %v410 = vld [vmem:[#allocation13 + $0x3c] sm:$0xf]
    %v411 = vunpack.c.l.bf16 %v403
    %v412 = vunpack.c.l.bf16 %v404
    %v413 = vunpack.c.l.bf16 %v405
    %v414 = vunpack.c.l.bf16 %v406
    %v415 = vunpack.c.l.bf16 %v407
    %v416 = vunpack.c.l.bf16 %v408
    %v417 = vunpack.c.l.bf16 %v409
    %v418 = vunpack.c.l.bf16 %v410
    %v420 = vsel %vm172, %v383, 0
    %v423 = vsel %vm172, %v384, 0
    %v426 = vsel %vm172, %v385, 0
    %v429 = vsel %vm172, %v386, 0
    %431 = vmatpush.msra.mxu0 0.0
    %432 = vmatpush.msra.mxu0 0.0
    %433 = vmatpush.msra.mxu0 0.0
    %434 = vmatpush.msra.mxu0 0.0
    %435 = vmatpush.msra.mxu0 0.0
    %436 = vmatpush.msra.mxu0 0.0
    %437 = vmatpush.msra.mxu0 0.0
    %438 = vmatpush.msra.mxu0 0.0
    %439 = vmatpush.msra.mxu0 %v418
    %440 = vmatpush.msra.mxu0 %v417
    %441 = vmatpush.msra.mxu0 %v416
    %442 = vmatpush.msra.mxu0 %v415
    %443 = vmatpush.msra.mxu0 %v414
    %444 = vmatpush.msra.mxu0 %v413
    %445 = vmatpush.msra.mxu0 %v412
    %446 = vmatpush.msra.mxu0 %v411
    %447 = vmatmul.f32.gmra.mxu0 %v420
    %v448 = vpop.f32.mrf.mxu0
    %v449 = vadd.f32 0.0, %v448
    %450 = vmatmul.f32.gmra.mxu0 %v423
    %v451 = vpop.f32.mrf.mxu0
    %v452 = vadd.f32 0.0, %v451
    %453 = vmatmul.f32.gmra.mxu0 %v426
    %v454 = vpop.f32.mrf.mxu0
    %v455 = vadd.f32 0.0, %v454
    %456 = vmatmul.f32.gmra.mxu0 %v429
    %v457 = vpop.f32.mrf.mxu0
    %v458 = vadd.f32 0.0, %v457
    %459 = vdwg.mxu0
    %v461 = vsel %vm172, %v379, 0
    %v464 = vsel %vm172, %v380, 0
    %v467 = vsel %vm172, %v381, 0
    %v470 = vsel %vm172, %v382, 0
    %472 = vmatpush.msra.mxu0 0.0
    %473 = vmatpush.msra.mxu0 0.0
    %474 = vmatpush.msra.mxu0 0.0
    %475 = vmatpush.msra.mxu0 0.0
    %476 = vmatpush.msra.mxu0 0.0
    %477 = vmatpush.msra.mxu0 0.0
    %478 = vmatpush.msra.mxu0 0.0
    %479 = vmatpush.msra.mxu0 0.0
    %480 = vmatpush.msra.mxu0 %v402
    %481 = vmatpush.msra.mxu0 %v401
    %482 = vmatpush.msra.mxu0 %v400
    %483 = vmatpush.msra.mxu0 %v399
    %484 = vmatpush.msra.mxu0 %v398
    %485 = vmatpush.msra.mxu0 %v397
    %486 = vmatpush.msra.mxu0 %v396
    %487 = vmatpush.msra.mxu0 %v395
    %488 = vmatmul.f32.gmra.mxu0 %v461
    %v489 = vpop.f32.mrf.mxu0
    %v490 = vadd.f32 %v449, %v489
    %491 = vmatmul.f32.gmra.mxu0 %v464
    %v492 = vpop.f32.mrf.mxu0
    %v493 = vadd.f32 %v452, %v492
    %494 = vmatmul.f32.gmra.mxu0 %v467
    %v495 = vpop.f32.mrf.mxu0
    %v496 = vadd.f32 %v455, %v495
    %497 = vmatmul.f32.gmra.mxu0 %v470
    %v498 = vpop.f32.mrf.mxu0
    %v499 = vadd.f32 %v458, %v498
    %500 = vdwg.mxu0
    %v501 = vld [vmem:[#allocation15] sm:$0x1]
    %v503 = vperm.slane %v501, 0
    %v505 = vadd.f32 %v490, %v503
    %v506 = vadd.f32 %v493, %v503
    %v507 = vadd.f32 %v496, %v503
    %v508 = vadd.f32 %v499, %v503
    %v509 = vmax.f32 %v505, 0.0
    %v510 = vmax.f32 %v506, 0.0
    %v511 = vmax.f32 %v507, 0.0
    %v512 = vmax.f32 %v508, 0.0
    %513 = vst [vmem:[#allocation4] sm:$0xff] %v509
    %514 = vst [vmem:[#allocation4 + $0x8] sm:$0xff] %v510
    %515 = vst [vmem:[#allocation4 + $0x10] sm:$0xff] %v511
    %516 = vst [vmem:[#allocation4 + $0x18] sm:$0xff] %v512
    %v517 = vld [vmem:[#allocation4] sm:$0xff]
    %v518 = vld [vmem:[#allocation4 + $0x8] sm:$0xff]
    %v519 = vld [vmem:[#allocation4 + $0x10] sm:$0xff]
    %v520 = vld [vmem:[#allocation4 + $0x18] sm:$0xff]
    %v521 = vld [vmem:[#allocation4 + $0x4] sm:$0xff]
    %v522 = vld [vmem:[#allocation4 + $0xc] sm:$0xff]
    %v523 = vld [vmem:[#allocation4 + $0x14] sm:$0xff]
    %v524 = vld [vmem:[#allocation4 + $0x1c] sm:$0xff]
    %v525 = vld [vmem:[%s7] sm:$0xff]
    %v526 = vld [vmem:[%s7 + $0x8] sm:$0xff]
    %v527 = vld [vmem:[%s7 + $0x10] sm:$0xff]
    %v528 = vld [vmem:[%s7 + $0x18] sm:$0xff]
    %v529 = vld [vmem:[%s7 + $0x20] sm:$0xff]
    %v530 = vld [vmem:[%s7 + $0x28] sm:$0xff]
    %v531 = vld [vmem:[%s7 + $0x30] sm:$0xff]
    %v532 = vld [vmem:[%s7 + $0x38] sm:$0xff]
    %v533 = vld [vmem:[%s7 + $0x40] sm:$0xff]
    %v534 = vld [vmem:[%s7 + $0x48] sm:$0xff]
    %v535 = vld [vmem:[%s7 + $0x50] sm:$0xff]
    %v536 = vld [vmem:[%s7 + $0x58] sm:$0xff]
    %v537 = vld [vmem:[%s7 + $0x60] sm:$0xff]
    %v538 = vld [vmem:[%s7 + $0x68] sm:$0xff]
    %v539 = vld [vmem:[%s7 + $0x70] sm:$0xff]
    %v540 = vld [vmem:[%s7 + $0x78] sm:$0xff]
    %v541 = vld [vmem:[%s7 + $0x80] sm:$0xff]
    %v542 = vld [vmem:[%s7 + $0x88] sm:$0xff]
    %v543 = vld [vmem:[%s7 + $0x90] sm:$0xff]
    %v544 = vld [vmem:[%s7 + $0x98] sm:$0xff]
    %v545 = vld [vmem:[%s7 + $0xa0] sm:$0xff]
    %v546 = vld [vmem:[%s7 + $0xa8] sm:$0xff]
    %v547 = vld [vmem:[%s7 + $0xb0] sm:$0xff]
    %v548 = vld [vmem:[%s7 + $0xb8] sm:$0xff]
    %v549 = vld [vmem:[%s7 + $0xc0] sm:$0xff]
    %v550 = vld [vmem:[%s7 + $0xc8] sm:$0xff]
    %v551 = vld [vmem:[%s7 + $0xd0] sm:$0xff]
    %v552 = vld [vmem:[%s7 + $0xd8] sm:$0xff]
    %v553 = vld [vmem:[%s7 + $0xe0] sm:$0xff]
    %v554 = vld [vmem:[%s7 + $0xe8] sm:$0xff]
    %v555 = vld [vmem:[%s7 + $0xf0] sm:$0xff]
    %v556 = vld [vmem:[%s7 + $0xf8] sm:$0xff]
    %v557 = vunpack.c.l.bf16 %v525
    %v558 = vunpack.c.h.bf16 %v525
    %v559 = vunpack.c.l.bf16 %v526
    %v560 = vunpack.c.h.bf16 %v526
    %v561 = vunpack.c.l.bf16 %v527
    %v562 = vunpack.c.h.bf16 %v527
    %v563 = vunpack.c.l.bf16 %v528
    %v564 = vunpack.c.h.bf16 %v528
    %v565 = vunpack.c.l.bf16 %v529
    %v566 = vunpack.c.h.bf16 %v529
    %v567 = vunpack.c.l.bf16 %v530
    %v568 = vunpack.c.h.bf16 %v530
    %v569 = vunpack.c.l.bf16 %v531
    %v570 = vunpack.c.h.bf16 %v531
    %v571 = vunpack.c.l.bf16 %v532
    %v572 = vunpack.c.h.bf16 %v532
    %v573 = vunpack.c.l.bf16 %v533
    %v574 = vunpack.c.h.bf16 %v533
    %v575 = vunpack.c.l.bf16 %v534
    %v576 = vunpack.c.h.bf16 %v534
    %v577 = vunpack.c.l.bf16 %v535
    %v578 = vunpack.c.h.bf16 %v535
    %v579 = vunpack.c.l.bf16 %v536
    %v580 = vunpack.c.h.bf16 %v536
    %v581 = vunpack.c.l.bf16 %v537
    %v582 = vunpack.c.h.bf16 %v537
    %v583 = vunpack.c.l.bf16 %v538
    %v584 = vunpack.c.h.bf16 %v538
    %v585 = vunpack.c.l.bf16 %v539
    %v586 = vunpack.c.h.bf16 %v539
    %v587 = vunpack.c.l.bf16 %v540
    %v588 = vunpack.c.h.bf16 %v540
    %v589 = vunpack.c.l.bf16 %v541
    %v590 = vunpack.c.h.bf16 %v541
    %v591 = vunpack.c.l.bf16 %v542
    %v592 = vunpack.c.h.bf16 %v542
    %v593 = vunpack.c.l.bf16 %v543
    %v594 = vunpack.c.h.bf16 %v543
    %v595 = vunpack.c.l.bf16 %v544
    %v596 = vunpack.c.h.bf16 %v544
    %v597 = vunpack.c.l.bf16 %v545
    %v598 = vunpack.c.h.bf16 %v545
    %v599 = vunpack.c.l.bf16 %v546
    %v600 = vunpack.c.h.bf16 %v546
    %v601 = vunpack.c.l.bf16 %v547
    %v602 = vunpack.c.h.bf16 %v547
    %v603 = vunpack.c.l.bf16 %v548
    %v604 = vunpack.c.h.bf16 %v548
    %v605 = vunpack.c.l.bf16 %v549
    %v606 = vunpack.c.h.bf16 %v549
    %v607 = vunpack.c.l.bf16 %v550
    %v608 = vunpack.c.h.bf16 %v550
    %v609 = vunpack.c.l.bf16 %v551
    %v610 = vunpack.c.h.bf16 %v551
    %v611 = vunpack.c.l.bf16 %v552
    %v612 = vunpack.c.h.bf16 %v552
    %v613 = vunpack.c.l.bf16 %v553
    %v614 = vunpack.c.h.bf16 %v553
    %v615 = vunpack.c.l.bf16 %v554
    %v616 = vunpack.c.h.bf16 %v554
    %v617 = vunpack.c.l.bf16 %v555
    %v618 = vunpack.c.h.bf16 %v555
    %v619 = vunpack.c.l.bf16 %v556
    %v620 = vunpack.c.h.bf16 %v556
    %v621 = vld [vmem:[#allocation16] sm:$0x3]
    %v623 = vperm.slane %v621, 0
    %v624 = vperm.slane %v621, 1
    %627 = vmatpush.msra.mxu0 %v587
    %628 = vmatpush.msra.mxu0 %v585
    %629 = vmatpush.msra.mxu0 %v583
    %630 = vmatpush.msra.mxu0 %v581
    %631 = vmatpush.msra.mxu0 %v579
    %632 = vmatpush.msra.mxu0 %v577
    %633 = vmatpush.msra.mxu0 %v575
    %634 = vmatpush.msra.mxu0 %v573
    %635 = vmatpush.msra.mxu0 %v571
    %636 = vmatpush.msra.mxu0 %v569
    %637 = vmatpush.msra.mxu0 %v567
    %638 = vmatpush.msra.mxu0 %v565
    %639 = vmatpush.msra.mxu0 %v563
    %640 = vmatpush.msra.mxu0 %v561
    %641 = vmatpush.msra.mxu0 %v559
    %642 = vmatpush.msra.mxu0 %v557
    %643 = vmatmul.f32.gmra.mxu0 %v517
    %v644 = vpop.f32.mrf.mxu0
    %v645 = vadd.f32 %v623, %v644
    %646 = vmatmul.f32.gmra.mxu0 %v518
    %v647 = vpop.f32.mrf.mxu0
    %v648 = vadd.f32 %v623, %v647
    %649 = vmatmul.f32.gmra.mxu0 %v519
    %v650 = vpop.f32.mrf.mxu0
    %v651 = vadd.f32 %v623, %v650
    %652 = vmatmul.f32.gmra.mxu0 %v520
    %v653 = vpop.f32.mrf.mxu0
    %v654 = vadd.f32 %v623, %v653
    %655 = vdwg.mxu0
    %656 = vmatpush.msra.mxu0 %v619
    %657 = vmatpush.msra.mxu0 %v617
    %658 = vmatpush.msra.mxu0 %v615
    %659 = vmatpush.msra.mxu0 %v613
    %660 = vmatpush.msra.mxu0 %v611
    %661 = vmatpush.msra.mxu0 %v609
    %662 = vmatpush.msra.mxu0 %v607
    %663 = vmatpush.msra.mxu0 %v605
    %664 = vmatpush.msra.mxu0 %v603
    %665 = vmatpush.msra.mxu0 %v601
    %666 = vmatpush.msra.mxu0 %v599
    %667 = vmatpush.msra.mxu0 %v597
    %668 = vmatpush.msra.mxu0 %v595
    %669 = vmatpush.msra.mxu0 %v593
    %670 = vmatpush.msra.mxu0 %v591
    %671 = vmatpush.msra.mxu0 %v589
    %672 = vmatmul.f32.gmra.mxu0 %v521
    %v673 = vpop.f32.mrf.mxu0
    %v674 = vadd.f32 %v645, %v673
    %675 = vmatmul.f32.gmra.mxu0 %v522
    %v676 = vpop.f32.mrf.mxu0
    %v677 = vadd.f32 %v648, %v676
    %678 = vmatmul.f32.gmra.mxu0 %v523
    %v679 = vpop.f32.mrf.mxu0
    %v680 = vadd.f32 %v651, %v679
    %681 = vmatmul.f32.gmra.mxu0 %v524
    %v682 = vpop.f32.mrf.mxu0
    %v683 = vadd.f32 %v654, %v682
    %684 = vdwg.mxu0
    %685 = vmatpush.msra.mxu0 %v588
    %686 = vmatpush.msra.mxu0 %v586
    %687 = vmatpush.msra.mxu0 %v584
    %688 = vmatpush.msra.mxu0 %v582
    %689 = vmatpush.msra.mxu0 %v580
    %690 = vmatpush.msra.mxu0 %v578
    %691 = vmatpush.msra.mxu0 %v576
    %692 = vmatpush.msra.mxu0 %v574
    %693 = vmatpush.msra.mxu0 %v572
    %694 = vmatpush.msra.mxu0 %v570
    %695 = vmatpush.msra.mxu0 %v568
    %696 = vmatpush.msra.mxu0 %v566
    %697 = vmatpush.msra.mxu0 %v564
    %698 = vmatpush.msra.mxu0 %v562
    %699 = vmatpush.msra.mxu0 %v560
    %700 = vmatpush.msra.mxu0 %v558
    %701 = vmatmul.f32.gmra.mxu0 %v517
    %v702 = vpop.f32.mrf.mxu0
    %v703 = vadd.f32 %v624, %v702
    %704 = vmatmul.f32.gmra.mxu0 %v518
    %v705 = vpop.f32.mrf.mxu0
    %v706 = vadd.f32 %v624, %v705
    %707 = vmatmul.f32.gmra.mxu0 %v519
    %v708 = vpop.f32.mrf.mxu0
    %v709 = vadd.f32 %v624, %v708
    %710 = vmatmul.f32.gmra.mxu0 %v520
    %v711 = vpop.f32.mrf.mxu0
    %v712 = vadd.f32 %v624, %v711
    %713 = vdwg.mxu0
    %714 = vmatpush.msra.mxu0 %v620
    %715 = vmatpush.msra.mxu0 %v618
    %716 = vmatpush.msra.mxu0 %v616
    %717 = vmatpush.msra.mxu0 %v614
    %718 = vmatpush.msra.mxu0 %v612
    %719 = vmatpush.msra.mxu0 %v610
    %720 = vmatpush.msra.mxu0 %v608
    %721 = vmatpush.msra.mxu0 %v606
    %722 = vmatpush.msra.mxu0 %v604
    %723 = vmatpush.msra.mxu0 %v602
    %724 = vmatpush.msra.mxu0 %v600
    %725 = vmatpush.msra.mxu0 %v598
    %726 = vmatpush.msra.mxu0 %v596
    %727 = vmatpush.msra.mxu0 %v594
    %728 = vmatpush.msra.mxu0 %v592
    %729 = vmatpush.msra.mxu0 %v590
    %730 = vmatmul.f32.gmra.mxu0 %v521
    %v731 = vpop.f32.mrf.mxu0
    %v732 = vadd.f32 %v703, %v731
    %733 = vmatmul.f32.gmra.mxu0 %v522
    %v734 = vpop.f32.mrf.mxu0
    %v735 = vadd.f32 %v706, %v734
    %736 = vmatmul.f32.gmra.mxu0 %v523
    %v737 = vpop.f32.mrf.mxu0
    %v738 = vadd.f32 %v709, %v737
    %739 = vmatmul.f32.gmra.mxu0 %v524
    %v740 = vpop.f32.mrf.mxu0
    %v741 = vadd.f32 %v712, %v740
    %742 = vdwg.mxu0
    %v743 = vmax.f32 %v674, 0.0
    %v744 = vmax.f32 %v732, 0.0
    %v745 = vmax.f32 %v677, 0.0
    %v746 = vmax.f32 %v735, 0.0
    %v747 = vmax.f32 %v680, 0.0
    %v748 = vmax.f32 %v738, 0.0
    %v749 = vmax.f32 %v683, 0.0
    %v750 = vmax.f32 %v741, 0.0
    %751 = vst [vmem:[#allocation5] sm:$0xff] %v743
    %752 = vst [vmem:[#allocation5 + $0x8] sm:$0xff] %v744
    %753 = vst [vmem:[#allocation5 + $0x10] sm:$0xff] %v745
    %754 = vst [vmem:[#allocation5 + $0x18] sm:$0xff] %v746
    %755 = vst [vmem:[#allocation5 + $0x20] sm:$0xff] %v747
    %756 = vst [vmem:[#allocation5 + $0x28] sm:$0xff] %v748
    %757 = vst [vmem:[#allocation5 + $0x30] sm:$0xff] %v749
    %758 = vst [vmem:[#allocation5 + $0x38] sm:$0xff] %v750
    %v759 = vld [vmem:[#allocation5] sm:$0xff]
    %v760 = vld [vmem:[#allocation5 + $0x8] sm:$0xff]
    %v761 = vld [vmem:[#allocation5 + $0x10] sm:$0xff]
    %v762 = vld [vmem:[#allocation5 + $0x18] sm:$0xff]
    %v763 = vld [vmem:[#allocation5 + $0x20] sm:$0xff]
    %v764 = vld [vmem:[#allocation5 + $0x28] sm:$0xff]
    %v765 = vld [vmem:[#allocation5 + $0x30] sm:$0xff]
    %v766 = vld [vmem:[#allocation5 + $0x38] sm:$0xff]
    %v767 = vld [vmem:[#allocation5] sm:$0xfe]
    %v768 = vld [vmem:[#allocation5 + $0x8] sm:$0xfe]
    %v769 = vld [vmem:[#allocation5 + $0x10] sm:$0xff]
    %v770 = vld [vmem:[#allocation5 + $0x18] sm:$0xff]
    %v771 = vld [vmem:[#allocation5 + $0x20] sm:$0xff]
    %v772 = vld [vmem:[#allocation5 + $0x28] sm:$0xff]
    %v773 = vld [vmem:[#allocation5 + $0x30] sm:$0xff]
    %v774 = vld [vmem:[#allocation5 + $0x38] sm:$0xff]
    %v775 = vld [vmem:[#allocation5 + $0x40] sm:$0x1]
    %v776 = vld [vmem:[#allocation5 + $0x48] sm:$0x1]
    %vm787 = vcmask 1046528
    %v788 = vrot.slane %v767, 1
    %v789 = vrot.slane %v769, 1
    %v790 = vsel %vm787, %v788, %v789
    %v791 = vrot.slane %v768, 1
    %v792 = vrot.slane %v770, 1
    %v793 = vsel %vm787, %v791, %v792
    %v794 = vrot.slane %v771, 1
    %v795 = vsel %vm787, %v789, %v794
    %v796 = vrot.slane %v772, 1
    %v797 = vsel %vm787, %v792, %v796
    %v798 = vrot.slane %v773, 1
    %v799 = vsel %vm787, %v794, %v798
    %v800 = vrot.slane %v774, 1
    %v801 = vsel %vm787, %v796, %v800
    %v802 = vrot.slane %v775, 1
    %v803 = vsel %vm787, %v798, %v802
    %v804 = vrot.slane %v776, 1
    %v805 = vsel %vm787, %v800, %v804
    %v814 = vld [vmem:[#allocation18] sm:$0xf]
    %v815 = vld [vmem:[#allocation18 + $0x4] sm:$0xf]
    %v816 = vld [vmem:[#allocation18 + $0x8] sm:$0xf]
    %v817 = vld [vmem:[#allocation18 + $0xc] sm:$0xf]
    %v818 = vld [vmem:[#allocation18 + $0x10] sm:$0xf]
    %v819 = vld [vmem:[#allocation18 + $0x14] sm:$0xf]
    %v820 = vld [vmem:[#allocation18 + $0x18] sm:$0xf]
    %v821 = vld [vmem:[#allocation18 + $0x1c] sm:$0xf]
    %v822 = vld [vmem:[#allocation18 + $0x20] sm:$0xf]
    %v823 = vld [vmem:[#allocation18 + $0x24] sm:$0xf]
    %v824 = vld [vmem:[#allocation18 + $0x28] sm:$0xf]
    %v825 = vld [vmem:[#allocation18 + $0x2c] sm:$0xf]
    %v826 = vld [vmem:[#allocation18 + $0x30] sm:$0xf]
    %v827 = vld [vmem:[#allocation18 + $0x34] sm:$0xf]
    %v828 = vld [vmem:[#allocation18 + $0x38] sm:$0xf]
    %v829 = vld [vmem:[#allocation18 + $0x3c] sm:$0xf]
    %v830 = vld [vmem:[#allocation18 + $0x40] sm:$0xf]
    %v831 = vld [vmem:[#allocation18 + $0x44] sm:$0xf]
    %v832 = vld [vmem:[#allocation18 + $0x48] sm:$0xf]
    %v833 = vld [vmem:[#allocation18 + $0x4c] sm:$0xf]
    %v834 = vld [vmem:[#allocation18 + $0x50] sm:$0xf]
    %v835 = vld [vmem:[#allocation18 + $0x54] sm:$0xf]
    %v836 = vld [vmem:[#allocation18 + $0x58] sm:$0xf]
    %v837 = vld [vmem:[#allocation18 + $0x5c] sm:$0xf]
    %v838 = vld [vmem:[#allocation18 + $0x60] sm:$0xf]
    %v839 = vld [vmem:[#allocation18 + $0x64] sm:$0xf]
    %v840 = vld [vmem:[#allocation18 + $0x68] sm:$0xf]
    %v841 = vld [vmem:[#allocation18 + $0x6c] sm:$0xf]
    %v842 = vld [vmem:[#allocation18 + $0x70] sm:$0xf]
    %v843 = vld [vmem:[#allocation18 + $0x74] sm:$0xf]
    %v844 = vld [vmem:[#allocation18 + $0x78] sm:$0xf]
    %v845 = vld [vmem:[#allocation18 + $0x7c] sm:$0xf]
    %v846 = vld [vmem:[#allocation18 + $0x80] sm:$0xf]
    %v847 = vld [vmem:[#allocation18 + $0x84] sm:$0xf]
    %v848 = vld [vmem:[#allocation18 + $0x88] sm:$0xf]
    %v849 = vld [vmem:[#allocation18 + $0x8c] sm:$0xf]
    %v850 = vld [vmem:[#allocation18 + $0x90] sm:$0xf]
    %v851 = vld [vmem:[#allocation18 + $0x94] sm:$0xf]
    %v852 = vld [vmem:[#allocation18 + $0x98] sm:$0xf]
    %v853 = vld [vmem:[#allocation18 + $0x9c] sm:$0xf]
    %v854 = vld [vmem:[#allocation18 + $0xa0] sm:$0xf]
    %v855 = vld [vmem:[#allocation18 + $0xa4] sm:$0xf]
    %v856 = vld [vmem:[#allocation18 + $0xa8] sm:$0xf]
    %v857 = vld [vmem:[#allocation18 + $0xac] sm:$0xf]
    %v858 = vld [vmem:[#allocation18 + $0xb0] sm:$0xf]
    %v859 = vld [vmem:[#allocation18 + $0xb4] sm:$0xf]
    %v860 = vld [vmem:[#allocation18 + $0xb8] sm:$0xf]
    %v861 = vld [vmem:[#allocation18 + $0xbc] sm:$0xf]
    %v862 = vld [vmem:[#allocation18 + $0xc0] sm:$0xf]
    %v863 = vld [vmem:[#allocation18 + $0xc4] sm:$0xf]
    %v864 = vld [vmem:[#allocation18 + $0xc8] sm:$0xf]
    %v865 = vld [vmem:[#allocation18 + $0xcc] sm:$0xf]
    %v866 = vld [vmem:[#allocation18 + $0xd0] sm:$0xf]
    %v867 = vld [vmem:[#allocation18 + $0xd4] sm:$0xf]
    %v868 = vld [vmem:[#allocation18 + $0xd8] sm:$0xf]
    %v869 = vld [vmem:[#allocation18 + $0xdc] sm:$0xf]
    %v870 = vld [vmem:[#allocation18 + $0xe0] sm:$0xf]
    %v871 = vld [vmem:[#allocation18 + $0xe4] sm:$0xf]
    %v872 = vld [vmem:[#allocation18 + $0xe8] sm:$0xf]
    %v873 = vld [vmem:[#allocation18 + $0xec] sm:$0xf]
    %v874 = vld [vmem:[#allocation18 + $0xf0] sm:$0xf]
    %v875 = vld [vmem:[#allocation18 + $0xf4] sm:$0xf]
    %v876 = vld [vmem:[#allocation18 + $0xf8] sm:$0xf]
    %v877 = vld [vmem:[#allocation18 + $0xfc] sm:$0xf]
    %v878 = vunpack.c.l.bf16 %v814
    %v879 = vunpack.c.l.bf16 %v815
    %v880 = vunpack.c.l.bf16 %v816
    %v881 = vunpack.c.l.bf16 %v817
    %v882 = vunpack.c.l.bf16 %v818
    %v883 = vunpack.c.l.bf16 %v819
    %v884 = vunpack.c.l.bf16 %v820
    %v885 = vunpack.c.l.bf16 %v821
    %v886 = vunpack.c.l.bf16 %v822
    %v887 = vunpack.c.l.bf16 %v823
    %v888 = vunpack.c.l.bf16 %v824
    %v889 = vunpack.c.l.bf16 %v825
    %v890 = vunpack.c.l.bf16 %v826
    %v891 = vunpack.c.l.bf16 %v827
    %v892 = vunpack.c.l.bf16 %v828
    %v893 = vunpack.c.l.bf16 %v829
    %v894 = vunpack.c.l.bf16 %v830
    %v895 = vunpack.c.l.bf16 %v831
    %v896 = vunpack.c.l.bf16 %v832
    %v897 = vunpack.c.l.bf16 %v833
    %v898 = vunpack.c.l.bf16 %v834
    %v899 = vunpack.c.l.bf16 %v835
    %v900 = vunpack.c.l.bf16 %v836
    %v901 = vunpack.c.l.bf16 %v837
    %v902 = vunpack.c.l.bf16 %v838
    %v903 = vunpack.c.l.bf16 %v839
    %v904 = vunpack.c.l.bf16 %v840
    %v905 = vunpack.c.l.bf16 %v841
    %v906 = vunpack.c.l.bf16 %v842
    %v907 = vunpack.c.l.bf16 %v843
    %v908 = vunpack.c.l.bf16 %v844
    %v909 = vunpack.c.l.bf16 %v845
    %v910 = vunpack.c.l.bf16 %v846
    %v911 = vunpack.c.l.bf16 %v847
    %v912 = vunpack.c.l.bf16 %v848
    %v913 = vunpack.c.l.bf16 %v849
    %v914 = vunpack.c.l.bf16 %v850
    %v915 = vunpack.c.l.bf16 %v851
    %v916 = vunpack.c.l.bf16 %v852
    %v917 = vunpack.c.l.bf16 %v853
    %v918 = vunpack.c.l.bf16 %v854
    %v919 = vunpack.c.l.bf16 %v855
    %v920 = vunpack.c.l.bf16 %v856
    %v921 = vunpack.c.l.bf16 %v857
    %v922 = vunpack.c.l.bf16 %v858
    %v923 = vunpack.c.l.bf16 %v859
    %v924 = vunpack.c.l.bf16 %v860
    %v925 = vunpack.c.l.bf16 %v861
    %v926 = vunpack.c.l.bf16 %v862
    %v927 = vunpack.c.l.bf16 %v863
    %v928 = vunpack.c.l.bf16 %v864
    %v929 = vunpack.c.l.bf16 %v865
    %v930 = vunpack.c.l.bf16 %v866
    %v931 = vunpack.c.l.bf16 %v867
    %v932 = vunpack.c.l.bf16 %v868
    %v933 = vunpack.c.l.bf16 %v869
    %v934 = vunpack.c.l.bf16 %v870
    %v935 = vunpack.c.l.bf16 %v871
    %v936 = vunpack.c.l.bf16 %v872
    %v937 = vunpack.c.l.bf16 %v873
    %v938 = vunpack.c.l.bf16 %v874
    %v939 = vunpack.c.l.bf16 %v875
    %v940 = vunpack.c.l.bf16 %v876
    %v941 = vunpack.c.l.bf16 %v877
    %v942 = vld [vmem:[#allocation19] sm:$0x1]
    %v944 = vperm.slane %v942, 0
    %946 = vmatpush.msra.mxu0 %v893
    %947 = vmatpush.msra.mxu0 %v892
    %948 = vmatpush.msra.mxu0 %v891
    %949 = vmatpush.msra.mxu0 %v890
    %950 = vmatpush.msra.mxu0 %v889
    %951 = vmatpush.msra.mxu0 %v888
    %952 = vmatpush.msra.mxu0 %v887
    %953 = vmatpush.msra.mxu0 %v886
    %954 = vmatpush.msra.mxu0 %v885
    %955 = vmatpush.msra.mxu0 %v884
    %956 = vmatpush.msra.mxu0 %v883
    %957 = vmatpush.msra.mxu0 %v882
    %958 = vmatpush.msra.mxu0 %v881
    %959 = vmatpush.msra.mxu0 %v880
    %960 = vmatpush.msra.mxu0 %v879
    %961 = vmatpush.msra.mxu0 %v878
    %962 = vmatmul.f32.gmra.mxu0 %v759
    %v963 = vpop.f32.mrf.mxu0
    %v964 = vadd.f32 %v944, %v963
    %965 = vmatmul.f32.gmra.mxu0 %v761
    %v966 = vpop.f32.mrf.mxu0
    %v967 = vadd.f32 %v944, %v966
    %968 = vmatmul.f32.gmra.mxu0 %v763
    %v969 = vpop.f32.mrf.mxu0
    %v970 = vadd.f32 %v944, %v969
    %971 = vmatmul.f32.gmra.mxu0 %v765
    %v972 = vpop.f32.mrf.mxu0
    %v973 = vadd.f32 %v944, %v972
    %974 = vdwg.mxu0
    %975 = vmatpush.msra.mxu0 %v909
    %976 = vmatpush.msra.mxu0 %v908
    %977 = vmatpush.msra.mxu0 %v907
    %978 = vmatpush.msra.mxu0 %v906
    %979 = vmatpush.msra.mxu0 %v905
    %980 = vmatpush.msra.mxu0 %v904
    %981 = vmatpush.msra.mxu0 %v903
    %982 = vmatpush.msra.mxu0 %v902
    %983 = vmatpush.msra.mxu0 %v901
    %984 = vmatpush.msra.mxu0 %v900
    %985 = vmatpush.msra.mxu0 %v899
    %986 = vmatpush.msra.mxu0 %v898
    %987 = vmatpush.msra.mxu0 %v897
    %988 = vmatpush.msra.mxu0 %v896
    %989 = vmatpush.msra.mxu0 %v895
    %990 = vmatpush.msra.mxu0 %v894
    %991 = vmatmul.f32.gmra.mxu0 %v760
    %v992 = vpop.f32.mrf.mxu0
    %v993 = vadd.f32 %v964, %v992
    %994 = vmatmul.f32.gmra.mxu0 %v762
    %v995 = vpop.f32.mrf.mxu0
    %v996 = vadd.f32 %v967, %v995
    %997 = vmatmul.f32.gmra.mxu0 %v764
    %v998 = vpop.f32.mrf.mxu0
    %v999 = vadd.f32 %v970, %v998
    %1000 = vmatmul.f32.gmra.mxu0 %v766
    %v1001 = vpop.f32.mrf.mxu0
    %v1002 = vadd.f32 %v973, %v1001
    %1003 = vdwg.mxu0
    %1004 = vmatpush.msra.mxu0 %v925
    %1005 = vmatpush.msra.mxu0 %v924
    %1006 = vmatpush.msra.mxu0 %v923
    %1007 = vmatpush.msra.mxu0 %v922
    %1008 = vmatpush.msra.mxu0 %v921
    %1009 = vmatpush.msra.mxu0 %v920
    %1010 = vmatpush.msra.mxu0 %v919
    %1011 = vmatpush.msra.mxu0 %v918
    %1012 = vmatpush.msra.mxu0 %v917
    %1013 = vmatpush.msra.mxu0 %v916
    %1014 = vmatpush.msra.mxu0 %v915
    %1015 = vmatpush.msra.mxu0 %v914
    %1016 = vmatpush.msra.mxu0 %v913
    %1017 = vmatpush.msra.mxu0 %v912
    %1018 = vmatpush.msra.mxu0 %v911
    %1019 = vmatpush.msra.mxu0 %v910
    %1020 = vmatmul.f32.gmra.mxu0 %v790
    %v1021 = vpop.f32.mrf.mxu0
    %v1022 = vadd.f32 %v993, %v1021
    %1023 = vmatmul.f32.gmra.mxu0 %v795
    %v1024 = vpop.f32.mrf.mxu0
    %v1025 = vadd.f32 %v996, %v1024
    %1026 = vmatmul.f32.gmra.mxu0 %v799
    %v1027 = vpop.f32.mrf.mxu0
    %v1028 = vadd.f32 %v999, %v1027
    %1029 = vmatmul.f32.gmra.mxu0 %v803
    %v1030 = vpop.f32.mrf.mxu0
    %v1031 = vadd.f32 %v1002, %v1030
    %1032 = vdwg.mxu0
    %1033 = vmatpush.msra.mxu0 %v941
    %1034 = vmatpush.msra.mxu0 %v940
    %1035 = vmatpush.msra.mxu0 %v939
    %1036 = vmatpush.msra.mxu0 %v938
    %1037 = vmatpush.msra.mxu0 %v937
    %1038 = vmatpush.msra.mxu0 %v936
    %1039 = vmatpush.msra.mxu0 %v935
    %1040 = vmatpush.msra.mxu0 %v934
    %1041 = vmatpush.msra.mxu0 %v933
    %1042 = vmatpush.msra.mxu0 %v932
    %1043 = vmatpush.msra.mxu0 %v931
    %1044 = vmatpush.msra.mxu0 %v930
    %1045 = vmatpush.msra.mxu0 %v929
    %1046 = vmatpush.msra.mxu0 %v928
    %1047 = vmatpush.msra.mxu0 %v927
    %1048 = vmatpush.msra.mxu0 %v926
    %1049 = vmatmul.f32.gmra.mxu0 %v793
    %v1050 = vpop.f32.mrf.mxu0
    %v1051 = vadd.f32 %v1022, %v1050
    %1052 = vmatmul.f32.gmra.mxu0 %v797
    %v1053 = vpop.f32.mrf.mxu0
    %v1054 = vadd.f32 %v1025, %v1053
    %1055 = vmatmul.f32.gmra.mxu0 %v801
    %v1056 = vpop.f32.mrf.mxu0
    %v1057 = vadd.f32 %v1028, %v1056
    %1058 = vmatmul.f32.gmra.mxu0 %v805
    %v1059 = vpop.f32.mrf.mxu0
    %v1060 = vadd.f32 %v1031, %v1059
    %1061 = vdwg.mxu0
    %v1062 = vmax.f32 %v1051, 0.0
    %v1063 = vmax.f32 %v1054, 0.0
    %v1064 = vmax.f32 %v1057, 0.0
    %v1065 = vmax.f32 %v1060, 0.0
    %1066 = vst [vmem:[#allocation6] sm:$0xff] %v1062
    %1067 = vst [vmem:[#allocation6 + $0x8] sm:$0xff] %v1063
    %1068 = vst [vmem:[#allocation6 + $0x10] sm:$0xff] %v1064
    %1069 = vst [vmem:[#allocation6 + $0x18] sm:$0xff] %v1065
    %v1070 = vld [vmem:[#allocation6] ss:$16 sm:$0x3]
    %s1071 = scalar_lea.vmem [#allocation6], 4
    %v1072 = vld [vmem:[%s1071] ss:$16 sm:$0x3]
    %v1073 = vld [vmem:[%s11] sm:$0xf]
    %v1074 = vld [vmem:[%s11 + $0x4] sm:$0xf]
    %v1075 = vld [vmem:[%s11 + $0x8] sm:$0xf]
    %v1076 = vld [vmem:[%s11 + $0xc] sm:$0xf]
    %v1077 = vld [vmem:[%s11 + $0x10] sm:$0xf]
    %v1078 = vld [vmem:[%s11 + $0x14] sm:$0xf]
    %v1079 = vld [vmem:[%s11 + $0x18] sm:$0xf]
    %v1080 = vld [vmem:[%s11 + $0x1c] sm:$0xf]
    %v1081 = vld [vmem:[%s11 + $0x20] sm:$0xf]
    %v1082 = vld [vmem:[%s11 + $0x24] sm:$0xf]
    %v1083 = vld [vmem:[%s11 + $0x28] sm:$0xf]
    %v1084 = vld [vmem:[%s11 + $0x2c] sm:$0xf]
    %v1085 = vld [vmem:[%s11 + $0x30] sm:$0xf]
    %v1086 = vld [vmem:[%s11 + $0x34] sm:$0xf]
    %v1087 = vld [vmem:[%s11 + $0x38] sm:$0xf]
    %v1088 = vld [vmem:[%s11 + $0x3c] sm:$0xf]
    %v1089 = vld [vmem:[%s11 + $0x40] sm:$0xf]
    %v1090 = vld [vmem:[%s11 + $0x44] sm:$0xf]
    %v1091 = vld [vmem:[%s11 + $0x48] sm:$0xf]
    %v1092 = vld [vmem:[%s11 + $0x4c] sm:$0xf]
    %v1093 = vld [vmem:[%s11 + $0x50] sm:$0xf]
    %v1094 = vld [vmem:[%s11 + $0x54] sm:$0xf]
    %v1095 = vld [vmem:[%s11 + $0x58] sm:$0xf]
    %v1096 = vld [vmem:[%s11 + $0x5c] sm:$0xf]
    %v1097 = vld [vmem:[%s11 + $0x60] sm:$0xf]
    %v1098 = vld [vmem:[%s11 + $0x64] sm:$0xf]
    %v1099 = vld [vmem:[%s11 + $0x68] sm:$0xf]
    %v1100 = vld [vmem:[%s11 + $0x6c] sm:$0xf]
    %v1101 = vld [vmem:[%s11 + $0x70] sm:$0xf]
    %v1102 = vld [vmem:[%s11 + $0x74] sm:$0xf]
    %v1103 = vld [vmem:[%s11 + $0x78] sm:$0xf]
    %v1104 = vld [vmem:[%s11 + $0x7c] sm:$0xf]
    %v1105 = vunpack.c.l.bf16 %v1073
    %v1106 = vunpack.c.l.bf16 %v1074
    %v1107 = vunpack.c.l.bf16 %v1075
    %v1108 = vunpack.c.l.bf16 %v1076
    %v1109 = vunpack.c.l.bf16 %v1077
    %v1110 = vunpack.c.l.bf16 %v1078
    %v1111 = vunpack.c.l.bf16 %v1079
    %v1112 = vunpack.c.l.bf16 %v1080
    %v1113 = vunpack.c.l.bf16 %v1081
    %v1114 = vunpack.c.l.bf16 %v1082
    %v1115 = vunpack.c.l.bf16 %v1083
    %v1116 = vunpack.c.l.bf16 %v1084
    %v1117 = vunpack.c.l.bf16 %v1085
    %v1118 = vunpack.c.l.bf16 %v1086
    %v1119 = vunpack.c.l.bf16 %v1087
    %v1120 = vunpack.c.l.bf16 %v1088
    %v1121 = vunpack.c.l.bf16 %v1089
    %v1122 = vunpack.c.l.bf16 %v1090
    %v1123 = vunpack.c.l.bf16 %v1091
    %v1124 = vunpack.c.l.bf16 %v1092
    %v1125 = vunpack.c.l.bf16 %v1093
    %v1126 = vunpack.c.l.bf16 %v1094
    %v1127 = vunpack.c.l.bf16 %v1095
    %v1128 = vunpack.c.l.bf16 %v1096
    %v1129 = vunpack.c.l.bf16 %v1097
    %v1130 = vunpack.c.l.bf16 %v1098
    %v1131 = vunpack.c.l.bf16 %v1099
    %v1132 = vunpack.c.l.bf16 %v1100
    %v1133 = vunpack.c.l.bf16 %v1101
    %v1134 = vunpack.c.l.bf16 %v1102
    %v1135 = vunpack.c.l.bf16 %v1103
    %v1136 = vunpack.c.l.bf16 %v1104
    %v1137 = vld [vmem:[%s12] sm:$0x1]
    %v1139 = vperm.slane %v1137, 0
    %1141 = vmatpush.msra.mxu0 %v1120
    %1142 = vmatpush.msra.mxu0 %v1119
    %1143 = vmatpush.msra.mxu0 %v1118
    %1144 = vmatpush.msra.mxu0 %v1117
    %1145 = vmatpush.msra.mxu0 %v1116
    %1146 = vmatpush.msra.mxu0 %v1115
    %1147 = vmatpush.msra.mxu0 %v1114
    %1148 = vmatpush.msra.mxu0 %v1113
    %1149 = vmatpush.msra.mxu0 %v1112
    %1150 = vmatpush.msra.mxu0 %v1111
    %1151 = vmatpush.msra.mxu0 %v1110
    %1152 = vmatpush.msra.mxu0 %v1109
    %1153 = vmatpush.msra.mxu0 %v1108
    %1154 = vmatpush.msra.mxu0 %v1107
    %1155 = vmatpush.msra.mxu0 %v1106
    %1156 = vmatpush.msra.mxu0 %v1105
    %1157 = vmatmul.f32.gmra.mxu0 %v1070
    %v1158 = vpop.f32.mrf.mxu0
    %v1159 = vadd.f32 %v1139, %v1158
    %1160 = vdwg.mxu0
    %1161 = vmatpush.msra.mxu0 %v1136
    %1162 = vmatpush.msra.mxu0 %v1135
    %1163 = vmatpush.msra.mxu0 %v1134
    %1164 = vmatpush.msra.mxu0 %v1133
    %1165 = vmatpush.msra.mxu0 %v1132
    %1166 = vmatpush.msra.mxu0 %v1131
    %1167 = vmatpush.msra.mxu0 %v1130
    %1168 = vmatpush.msra.mxu0 %v1129
    %1169 = vmatpush.msra.mxu0 %v1128
    %1170 = vmatpush.msra.mxu0 %v1127
    %1171 = vmatpush.msra.mxu0 %v1126
    %1172 = vmatpush.msra.mxu0 %v1125
    %1173 = vmatpush.msra.mxu0 %v1124
    %1174 = vmatpush.msra.mxu0 %v1123
    %1175 = vmatpush.msra.mxu0 %v1122
    %1176 = vmatpush.msra.mxu0 %v1121
    %1177 = vmatmul.f32.gmra.mxu0 %v1072
    %v1178 = vpop.f32.mrf.mxu0
    %v1179 = vadd.f32 %v1159, %v1178
    %1180 = vdwg.mxu0
    %v1181 = vmax.f32 %v1179, 0.0
    %v1182 = vld [vmem:[%s13] sm:$0xf]
    %v1183 = vld [vmem:[%s13 + $0x4] sm:$0xf]
    %v1184 = vld [vmem:[%s13 + $0x8] sm:$0xf]
    %v1185 = vld [vmem:[%s13 + $0xc] sm:$0xf]
    %v1186 = vld [vmem:[%s13 + $0x10] sm:$0xf]
    %v1187 = vld [vmem:[%s13 + $0x14] sm:$0xf]
    %v1188 = vld [vmem:[%s13 + $0x18] sm:$0xf]
    %v1189 = vld [vmem:[%s13 + $0x1c] sm:$0xf]
    %v1190 = vunpack.c.l.bf16 %v1182
    %v1191 = vunpack.c.l.bf16 %v1183
    %v1192 = vunpack.c.l.bf16 %v1184
    %v1193 = vunpack.c.l.bf16 %v1185
    %v1194 = vunpack.c.l.bf16 %v1186
    %v1195 = vunpack.c.l.bf16 %v1187
    %v1196 = vunpack.c.l.bf16 %v1188
    %v1197 = vunpack.c.l.bf16 %v1189
    %v1198 = vld [vmem:[%s14] sm:$0x1]
    %v1200 = vperm.slane %v1198, 0
    %v1203 = vsel %vm172, %v1181, 0
    %1205 = vmatpush.msra.mxu0 0.0
    %1206 = vmatpush.msra.mxu0 0.0
    %1207 = vmatpush.msra.mxu0 0.0
    %1208 = vmatpush.msra.mxu0 0.0
    %1209 = vmatpush.msra.mxu0 0.0
    %1210 = vmatpush.msra.mxu0 0.0
    %1211 = vmatpush.msra.mxu0 0.0
    %1212 = vmatpush.msra.mxu0 0.0
    %1213 = vmatpush.msra.mxu0 %v1197
    %1214 = vmatpush.msra.mxu0 %v1196
    %1215 = vmatpush.msra.mxu0 %v1195
    %1216 = vmatpush.msra.mxu0 %v1194
    %1217 = vmatpush.msra.mxu0 %v1193
    %1218 = vmatpush.msra.mxu0 %v1192
    %1219 = vmatpush.msra.mxu0 %v1191
    %1220 = vmatpush.msra.mxu0 %v1190
    %1221 = vmatmul.f32.gmra.mxu0 %v1203
    %v1222 = vpop.f32.mrf.mxu0
    %v1223 = vadd.f32 %v1200, %v1222
    %1224 = vdwg.mxu0
    %v1225 = vmax.f32 %v1223, 0.0
    %v1226 = vld [vmem:[%s15] sm:$0xf]
    %v1227 = vld [vmem:[%s15 + $0x4] sm:$0xf]
    %v1228 = vunpack.c.l.bf16 %v1226
    %v1229 = vunpack.c.l.bf16 %v1227
    %v1230 = vld [vmem:[%s16] sm:$0x1]
    %v1232 = vperm.slane %v1230, 0
    %vm1234 = vcmask 130048
    %v1236 = vsel %vm1234, %v1225, 0
    %1238 = vmatpush.msra.mxu0 0.0
    %1239 = vmatpush.msra.mxu0 0.0
    %1240 = vmatpush.msra.mxu0 0.0
    %1241 = vmatpush.msra.mxu0 0.0
    %1242 = vmatpush.msra.mxu0 0.0
    %1243 = vmatpush.msra.mxu0 0.0
    %1244 = vmatpush.msra.mxu0 0.0
    %1245 = vmatpush.msra.mxu0 0.0
    %1246 = vmatpush.msra.mxu0 0.0
    %1247 = vmatpush.msra.mxu0 0.0
    %1248 = vmatpush.msra.mxu0 0.0
    %1249 = vmatpush.msra.mxu0 0.0
    %1250 = vmatpush.msra.mxu0 0.0
    %1251 = vmatpush.msra.mxu0 0.0
    %1252 = vmatpush.msra.mxu0 %v1229
    %1253 = vmatpush.msra.mxu0 %v1228
    %1254 = vmatmul.f32.gmra.mxu0 %v1236
    %v1255 = vpop.f32.mrf.mxu0
    %v1256 = vadd.f32 %v1232, %v1255
    %1257 = vdwg.mxu0
    %vm1258 = vcmask 25600
    %v1259 = vsel %vm1258, %v1256, -inf
    %1260 = vmax.xlane.f32.xlu0 %v1259
    %v1261 = vpop.xlane.xlu0 %1260
    %v1262 = vsub.f32 %v1256, %v1261
    %v1263 = vmul.f32 %v1262, 1.442695
    %v1264 = vpow.pop %v1263
    %v1265 = vsel %vm1258, %v1264, 0.0
    %1266 = vadd.xlane.f32.xlu0 %v1265
    %v1267 = vpop.xlane.xlu0 %1266
    %v1268 = vlog2.pop %v1267
    %v1269 = vmul.f32 %v1268, 0.6931472
    %v1270 = vsub.f32 %v1262, %v1269
    %1271 = vst.msk [vmem:[#allocation21] sm:$0x3] %vm1258, %v1270
    // Predicated region
    $region102: #{tpu_custom_call.1} parent=1 // pred_check
      _
    $region103: #{tpu_custom_call.1} parent=1 // pred_check_branch
      %1273 = sbr.rel (0) target = $region105
    $region104: #{tpu_custom_call.1} parent=1 // pred_region
      %1275 = vsyncadd [#allocation9], 0
      %s1277 = sshll.u32 [#allocation21], 4
      %s1278 = int_to_ptr.vmem [resolvable:$true] %s1277
      %s1279 = sshll.u32 %s17, 4
      %s1280 = int_to_ptr.hbm [resolvable:$true] %s1279
      %1282 = dma.vmem_to_hbm [thread:$0]  %s1278, 32, %s1280, [#allocation9]
    $region105: #{tpu_custom_call.1} parent=1 // pred_fallthru
      _
    // Predicated region
    $region106: #{tpu_custom_call.1} parent=1 // pred_check
      _
    $region107: #{tpu_custom_call.1} parent=1 // pred_check_branch
      %1284 = sbr.rel (0) target = $region109
    $region108: #{tpu_custom_call.1} parent=1 // pred_region
      %1286 = dma.done [#allocation9], 32
    $region109: #{tpu_custom_call.1} parent=1 // pred_fallthru
      _
    %1287 = vsyncpa [#allocation8], 1
    %1288 = vsyncpa [#allocation11], 1
    %1289 = vsyncpa [#allocation14], 1
    %1290 = vsyncpa [#allocation17], 1
    %1291 = vsyncpa [#allocation20], 1
    %1292 = vsyncpa [#allocation9], 1

</llo_original>
